<compile_context>
chip_gen: v7x
topology: tpu7x:2x2x1
jax: 0.10.0
libtpu: 0.0.40
codegen_flags: <defaults>
</compile_context>

<pallas_src>
import functools
import math

import jax
import jax.numpy as jnp
import numpy as np
from jax import lax
from jax.experimental import pallas as pl
from jax.experimental.pallas import tpu as pltpu


@functools.lru_cache(maxsize=None)
def _pd_constants(size, diagonal):
    """0/1 gather/scatter matrices expressing Omega = L_chol @ L_chol^T over the packed vec."""
    tril = {}
    t = 0
    for i in range(size):
        for k in range(i + 1):
            tril[(i, k)] = t
            t += 1
    vec_dim = t

    pairs = []  # (packed idx 1, packed idx 2, [flat output columns])
    if diagonal:
        for i in range(size):
            d = tril[(i, i)]
            pairs.append((d, d, [i * size + i]))
    else:
        for i in range(size):
            for j in range(i + 1):
                for k in range(j + 1):  # k <= j <= i
                    cols = [i * size + j] + ([j * size + i] if i != j else [])
                    pairs.append((tril[(i, k)], tril[(j, k)], cols))

    n_pairs = len(pairs)
    g1 = np.zeros((vec_dim, n_pairs), np.float32)
    g2 = np.zeros((vec_dim, n_pairs), np.float32)
    m = np.zeros((n_pairs, size * size), np.float32)
    for p, (t1, t2, cols) in enumerate(pairs):
        g1[t1, p] = 1.0
        g2[t2, p] = 1.0
        for c in cols:
            m[p, c] = 1.0
    return g1, g2, m


def _pd_kernel(v_ref, g1_ref, g2_ref, m_ref, o_ref, *, size, vec_dim, min_diag):
    # v_ref: (TB, vec_dim) packed tril values, batch on sublanes (no layout plumbing outside)
    # o_ref: (TB, size*size) row-major flattened Omega
    f32 = jnp.float32
    v = v_ref[...].astype(f32)
    tb = v.shape[0]

    # softplus only on the lanes holding diagonal entries of L (packed offset i*(i+1)//2 + i)
    lane = lax.broadcasted_iota(jnp.int32, (tb, vec_dim), 1)
    diag_lanes = [i * (i + 1) // 2 + i for i in range(size)]
    is_diag = lane == diag_lanes[0]
    for t in diag_lanes[1:]:
        is_diag = jnp.logical_or(is_diag, lane == t)
    vprime = jnp.where(is_diag, jnp.logaddexp(0.0, v), v)   # softplus on diag lanes (EUP)

    # Gather the two factors of every needed product and scatter-add into Omega columns.
    # 0/1 constant matrices + HIGHEST precision => exact f32 (matches the elementwise ref).
    dot = functools.partial(jnp.dot, preferred_element_type=f32,
                            precision=lax.Precision.HIGHEST)
    a = dot(vprime, g1_ref[...])          # (TB, n_pairs)
    b = dot(vprime, g2_ref[...])          # (TB, n_pairs)
    omega = dot(a * b, m_ref[...])        # (TB, size*size)

    # Omega[i, i] += min_diag   (flat column i*(size+1))
    col = lax.broadcasted_iota(jnp.int32, (tb, size * size), 1)
    is_out_diag = col == 0
    for i in range(1, size):
        is_out_diag = jnp.logical_or(is_out_diag, col == i * (size + 1))
    omega = omega + jnp.where(is_out_diag, f32(min_diag), f32(0.0))

    o_ref[...] = omega.astype(o_ref.dtype)


def _choose_batch_tile(batch):
    """Batch rows per block: cap for vreg pressure, keep >= 4 grid steps for large batches."""
    if batch <= 128:
        return batch                      # block dims == full array dims -> always legal
    tb = 256                              # (TB, ~128-lane) f32 intermediates stay modest
    while tb > 128 and pl.cdiv(batch, tb) < 4:
        tb -= 128
    return tb


@functools.partial(jax.jit, static_argnames=("min_diag", "diagonal"))
def positive_definite_matrix(L_vec, min_diag=1e-8, diagonal=False):
    """L_vec: (batch, size*(size+1)//2) -> Omega: (batch, size, size)."""
    batch, vec_dim = L_vec.shape
    size = int(round((math.sqrt(1 + 8 * vec_dim) - 1) / 2))
    assert size * (size + 1) // 2 == vec_dim, "L_vec dim must be a triangular number"

    g1_np, g2_np, m_np = _pd_constants(size, diagonal)
    n_pairs = g1_np.shape[1]
    g1, g2, m = jnp.asarray(g1_np), jnp.asarray(g2_np), jnp.asarray(m_np)

    tb = _choose_batch_tile(batch)
    grid = (pl.cdiv(batch, tb),)

    # Explicit, accurate VMEM budget: double-buffered I/O blocks + constants + f32 temporaries.
    itemsize = jnp.dtype(L_vec.dtype).itemsize
    io_bytes = 2 * tb * (vec_dim + size * size) * itemsize
    const_bytes = 2 * (2 * vec_dim * n_pairs + n_pairs * size * size) * 4
    scratch_bytes = 8 * tb * 128 * 4
    vmem_limit = int(min(96 * 2**20, io_bytes + const_bytes + scratch_bytes + (8 << 20)))

    kernel = functools.partial(_pd_kernel, size=size, vec_dim=vec_dim, min_diag=min_diag)

    out_flat = pl.pallas_call(
        kernel,
        out_shape=jax.ShapeDtypeStruct((batch, size * size), L_vec.dtype),
        grid_spec=pltpu.PrefetchScalarGridSpec(
            num_scalar_prefetch=0,
            grid=grid,
            in_specs=[
                pl.BlockSpec((tb, vec_dim), lambda bb: (bb, 0)),
                pl.BlockSpec((vec_dim, n_pairs), lambda bb: (0, 0)),        # constant block:
                pl.BlockSpec((vec_dim, n_pairs), lambda bb: (0, 0)),        # fetched once
                pl.BlockSpec((n_pairs, size * size), lambda bb: (0, 0)),
            ],
            out_specs=pl.BlockSpec((tb, size * size), lambda bb: (bb, 0)),
        ),
        compiler_params=pltpu.CompilerParams(
            dimension_semantics=("parallel",),
            vmem_limit_bytes=vmem_limit,
        ),
    )(L_vec, g1, g2, m)

    return out_flat.reshape(batch, size, size)   # metadata-only reshape (no transpose)


def _reference(L_vec, min_diag=1e-8, diagonal=False):
    """Pure-JAX reference mirroring the PyTorch module (no dot, exact f32)."""
    batch, vec_dim = L_vec.shape
    size = int(round((math.sqrt(1 + 8 * vec_dim) - 1) / 2))
    i, j = jnp.tril_indices(size)
    L = jnp.zeros((batch, size, size), dtype=L_vec.dtype).at[:, i, j].set(L_vec)
    below = jnp.tril(L, k=-1)
    diag = jax.nn.softplus(jnp.diagonal(L, axis1=-2, axis2=-1))
    L_diag = jax.vmap(jnp.diag)(diag)
    L_chol = L_diag if diagonal else L_diag + below
    omega = (L_chol[:, :, None, :] * L_chol[:, None, :, :]).sum(-1)
    idx = jnp.arange(size)
    return omega.at[:, idx, idx].add(min_diag)


if __name__ == "__main__":
    key = jax.random.PRNGKey(0)
    k1, k2 = jax.random.split(key)

    # Case 1: tiny batch (single block, block dims == full array dims).
    batch, size = 2, 8
    vec_dim = size * (size + 1) // 2                     # 36
    L_vec = jax.random.normal(k1, (batch, vec_dim), dtype=jnp.float32)
    omega = positive_definite_matrix(L_vec)
    jax.block_until_ready(omega)
    assert omega.shape == (batch, size, size)
    assert jnp.allclose(omega, _reference(L_vec), atol=1e-4, rtol=1e-4), "mismatch (small)"

    # Case 2: larger batch -> 128-row blocks, multiple grid steps.
    batch2, size2 = 256, 6
    vec_dim2 = size2 * (size2 + 1) // 2                  # 21
    L_vec2 = jax.random.normal(k2, (batch2, vec_dim2), dtype=jnp.float32)
    omega2 = positive_definite_matrix(L_vec2)
    jax.block_until_ready(omega2)
    assert omega2.shape == (batch2, size2, size2)
    assert jnp.allclose(omega2, _reference(L_vec2), atol=1e-4, rtol=1e-4), "mismatch (large)"

    # Case 3: diagonal=True path (same kernel, different constants).
    omega3 = positive_definite_matrix(L_vec, diagonal=True)
    jax.block_until_ready(omega3)
    assert jnp.allclose(omega3, _reference(L_vec, diagonal=True), atol=1e-4, rtol=1e-4), \
        "mismatch (diagonal)"

    print("KERNEL_OK")
</pallas_src>

<mosaic_0001>
module attributes {stable_mosaic.version = 11 : i64} {
  func.func @_pd_kernel(%arg0: i32, %arg1: memref<2x36xf32, #tpu.memory_space<vmem>>, %arg2: memref<36x120xf32, #tpu.memory_space<vmem>>, %arg3: memref<36x120xf32, #tpu.memory_space<vmem>>, %arg4: memref<120x64xf32, #tpu.memory_space<vmem>>, %arg5: memref<2x64xf32, #tpu.memory_space<vmem>>) attributes {dimension_semantics = [#tpu.dimension_semantics<parallel>], iteration_bounds = array<i64: 1>, scalar_prefetch = 0 : i64, scratch_operands = 0 : i64, tpu.core_type = #tpu.core_type<tc>, window_params = [{transform_indices = @transform_0, window_bounds = array<i64: 2, 36>}, {pipeline_mode = #tpu.pipeline_mode<synchronous>, transform_indices = @transform_1, window_bounds = array<i64: 36, 120>}, {pipeline_mode = #tpu.pipeline_mode<synchronous>, transform_indices = @transform_2, window_bounds = array<i64: 36, 120>}, {pipeline_mode = #tpu.pipeline_mode<synchronous>, transform_indices = @transform_3, window_bounds = array<i64: 120, 64>}, {transform_indices = @transform_4, window_bounds = array<i64: 2, 64>}]} {
    %c0 = arith.constant 0 : index
    %c0_0 = arith.constant 0 : index
    %0 = vector.load %arg1[%c0, %c0_0] : memref<2x36xf32, #tpu.memory_space<vmem>>, vector<2x36xf32>
    %1 = tpu.iota {dimensions = array<i32: 1>} : vector<2x36xi32>
    %c0_i32 = arith.constant 0 : i32
    %2 = vector.broadcast %c0_i32 : i32 to vector<2x36xi32>
    %3 = arith.cmpi eq, %1, %2 : vector<2x36xi32>
    %c2_i32 = arith.constant 2 : i32
    %4 = vector.broadcast %c2_i32 : i32 to vector<2x36xi32>
    %5 = arith.cmpi eq, %1, %4 : vector<2x36xi32>
    %6 = arith.ori %3, %5 : vector<2x36xi1>
    %c5_i32 = arith.constant 5 : i32
    %7 = vector.broadcast %c5_i32 : i32 to vector<2x36xi32>
    %8 = arith.cmpi eq, %1, %7 : vector<2x36xi32>
    %9 = arith.ori %6, %8 : vector<2x36xi1>
    %c9_i32 = arith.constant 9 : i32
    %10 = vector.broadcast %c9_i32 : i32 to vector<2x36xi32>
    %11 = arith.cmpi eq, %1, %10 : vector<2x36xi32>
    %12 = arith.ori %9, %11 : vector<2x36xi1>
    %c14_i32 = arith.constant 14 : i32
    %13 = vector.broadcast %c14_i32 : i32 to vector<2x36xi32>
    %14 = arith.cmpi eq, %1, %13 : vector<2x36xi32>
    %15 = arith.ori %12, %14 : vector<2x36xi1>
    %c20_i32 = arith.constant 20 : i32
    %16 = vector.broadcast %c20_i32 : i32 to vector<2x36xi32>
    %17 = arith.cmpi eq, %1, %16 : vector<2x36xi32>
    %18 = arith.ori %15, %17 : vector<2x36xi1>
    %c27_i32 = arith.constant 27 : i32
    %19 = vector.broadcast %c27_i32 : i32 to vector<2x36xi32>
    %20 = arith.cmpi eq, %1, %19 : vector<2x36xi32>
    %21 = arith.ori %18, %20 : vector<2x36xi1>
    %c35_i32 = arith.constant 35 : i32
    %22 = vector.broadcast %c35_i32 : i32 to vector<2x36xi32>
    %23 = arith.cmpi eq, %1, %22 : vector<2x36xi32>
    %24 = arith.ori %21, %23 : vector<2x36xi1>
    %cst = arith.constant 0.000000e+00 : f32
    %25 = vector.broadcast %cst : f32 to vector<2x36xf32>
    %26 = arith.maximumf %25, %0 : vector<2x36xf32>
    %27 = vector.broadcast %cst : f32 to vector<2x36xf32>
    %28 = arith.subf %27, %0 : vector<2x36xf32>
    %29 = arith.cmpf one, %28, %28 : vector<2x36xf32>
    %30 = vector.broadcast %cst : f32 to vector<2x36xf32>
    %31 = arith.addf %30, %0 : vector<2x36xf32>
    %32 = math.absf %28 : vector<2x36xf32>
    %cst_1 = arith.constant 0.000000e+00 : f32
    %33 = vector.broadcast %cst_1 : f32 to vector<2x36xf32>
    %34 = arith.subf %33, %32 : vector<2x36xf32>
    %35 = math.exp %34 : vector<2x36xf32>
    %36 = math.log1p %35 : vector<2x36xf32>
    %37 = arith.addf %26, %36 : vector<2x36xf32>
    %38 = arith.select %29, %31, %37 : vector<2x36xi1>, vector<2x36xf32>
    %39 = arith.select %24, %38, %0 : vector<2x36xi1>, vector<2x36xf32>
    %c0_2 = arith.constant 0 : index
    %c0_3 = arith.constant 0 : index
    %40 = vector.load %arg2[%c0_2, %c0_3] : memref<36x120xf32, #tpu.memory_space<vmem>>, vector<36x120xf32>
    %cst_4 = arith.constant dense<0.000000e+00> : vector<2x120xf32>
    %41 = tpu.matmul %39, %40, %cst_4 {dimension_numbers = #tpu.dot_dimension_numbers<[1], [0], [0], [1], [0, 0, 1, 1], [], []>, precision = #tpu.contract_precision<fp32>} : vector<2x36xf32>, vector<36x120xf32>, vector<2x120xf32> -> vector<2x120xf32>
    %c0_5 = arith.constant 0 : index
    %c0_6 = arith.constant 0 : index
    %42 = vector.load %arg3[%c0_5, %c0_6] : memref<36x120xf32, #tpu.memory_space<vmem>>, vector<36x120xf32>
    %cst_7 = arith.constant dense<0.000000e+00> : vector<2x120xf32>
    %43 = tpu.matmul %39, %42, %cst_7 {dimension_numbers = #tpu.dot_dimension_numbers<[1], [0], [0], [1], [0, 0, 1, 1], [], []>, precision = #tpu.contract_precision<fp32>} : vector<2x36xf32>, vector<36x120xf32>, vector<2x120xf32> -> vector<2x120xf32>
    %44 = arith.mulf %41, %43 : vector<2x120xf32>
    %c0_8 = arith.constant 0 : index
    %c0_9 = arith.constant 0 : index
    %45 = vector.load %arg4[%c0_8, %c0_9] : memref<120x64xf32, #tpu.memory_space<vmem>>, vector<120x64xf32>
    %cst_10 = arith.constant dense<0.000000e+00> : vector<2x64xf32>
    %46 = tpu.matmul %44, %45, %cst_10 {dimension_numbers = #tpu.dot_dimension_numbers<[1], [0], [0], [1], [0, 0, 1, 1], [], []>, precision = #tpu.contract_precision<fp32>} : vector<2x120xf32>, vector<120x64xf32>, vector<2x64xf32> -> vector<2x64xf32>
    %47 = tpu.iota {dimensions = array<i32: 1>} : vector<2x64xi32>
    %c0_i32_11 = arith.constant 0 : i32
    %48 = vector.broadcast %c0_i32_11 : i32 to vector<2x64xi32>
    %49 = arith.cmpi eq, %47, %48 : vector<2x64xi32>
    %c9_i32_12 = arith.constant 9 : i32
    %50 = vector.broadcast %c9_i32_12 : i32 to vector<2x64xi32>
    %51 = arith.cmpi eq, %47, %50 : vector<2x64xi32>
    %52 = arith.ori %49, %51 : vector<2x64xi1>
    %c18_i32 = arith.constant 18 : i32
    %53 = vector.broadcast %c18_i32 : i32 to vector<2x64xi32>
    %54 = arith.cmpi eq, %47, %53 : vector<2x64xi32>
    %55 = arith.ori %52, %54 : vector<2x64xi1>
    %c27_i32_13 = arith.constant 27 : i32
    %56 = vector.broadcast %c27_i32_13 : i32 to vector<2x64xi32>
    %57 = arith.cmpi eq, %47, %56 : vector<2x64xi32>
    %58 = arith.ori %55, %57 : vector<2x64xi1>
    %c36_i32 = arith.constant 36 : i32
    %59 = vector.broadcast %c36_i32 : i32 to vector<2x64xi32>
    %60 = arith.cmpi eq, %47, %59 : vector<2x64xi32>
    %61 = arith.ori %58, %60 : vector<2x64xi1>
    %c45_i32 = arith.constant 45 : i32
    %62 = vector.broadcast %c45_i32 : i32 to vector<2x64xi32>
    %63 = arith.cmpi eq, %47, %62 : vector<2x64xi32>
    %64 = arith.ori %61, %63 : vector<2x64xi1>
    %c54_i32 = arith.constant 54 : i32
    %65 = vector.broadcast %c54_i32 : i32 to vector<2x64xi32>
    %66 = arith.cmpi eq, %47, %65 : vector<2x64xi32>
    %67 = arith.ori %64, %66 : vector<2x64xi1>
    %c63_i32 = arith.constant 63 : i32
    %68 = vector.broadcast %c63_i32 : i32 to vector<2x64xi32>
    %69 = arith.cmpi eq, %47, %68 : vector<2x64xi32>
    %70 = arith.ori %67, %69 : vector<2x64xi1>
    %cst_14 = arith.constant 9.99999993E-9 : f32
    %cst_15 = arith.constant 0.000000e+00 : f32
    %71 = vector.broadcast %cst_14 : f32 to vector<2x64xf32>
    %72 = vector.broadcast %cst_15 : f32 to vector<2x64xf32>
    %73 = arith.select %70, %71, %72 : vector<2x64xi1>, vector<2x64xf32>
    %74 = arith.addf %46, %73 : vector<2x64xf32>
    %c0_16 = arith.constant 0 : index
    %c0_17 = arith.constant 0 : index
    %75 = vector.load %arg5[%c0_16, %c0_17] : memref<2x64xf32, #tpu.memory_space<vmem>>, vector<2x64xf32>
    tpu.vector_store %arg5[%c0_16, %c0_17], %74 {strides = array<i32>} : memref<2x64xf32, #tpu.memory_space<vmem>>, vector<2x64xf32>,
    return
  }
  func.func @transform_0(%arg0: i32) -> (i32, i32) {
    %c0_i32 = arith.constant 0 : i32
    %c0_i32_0 = arith.constant 0 : i32
    return %arg0, %c0_i32 : i32, i32
  }
  func.func @transform_1(%arg0: i32) -> (i32, i32) {
    %c0_i32 = arith.constant 0 : i32
    %c0_i32_0 = arith.constant 0 : i32
    %c0_i32_1 = arith.constant 0 : i32
    return %c0_i32, %c0_i32_0 : i32, i32
  }
  func.func @transform_2(%arg0: i32) -> (i32, i32) {
    %c0_i32 = arith.constant 0 : i32
    %c0_i32_0 = arith.constant 0 : i32
    %c0_i32_1 = arith.constant 0 : i32
    return %c0_i32, %c0_i32_0 : i32, i32
  }
  func.func @transform_3(%arg0: i32) -> (i32, i32) {
    %c0_i32 = arith.constant 0 : i32
    %c0_i32_0 = arith.constant 0 : i32
    %c0_i32_1 = arith.constant 0 : i32
    return %c0_i32, %c0_i32_0 : i32, i32
  }
  func.func @transform_4(%arg0: i32) -> (i32, i32) {
    %c0_i32 = arith.constant 0 : i32
    %c0_i32_0 = arith.constant 0 : i32
    return %arg0, %c0_i32 : i32, i32
  }
}

</mosaic_0001>

<llo_original>
// kernel: positive_definite_matrix.1
$region0: #{positive_definite_matrix.1}
  #allocation0 [shape = 'u32[]', space=smem, size = 0x4, offset = 0x4, fixed_abs, tag = 'smem constant byte address 0x4 - core index']
  #allocation1 [shape = 'u32[144,128]{1,0:T(1,128)}', space=vmem, size = 0x12000, scoped, tag = 'internal scratch']
  %s0 = inlined_call_operand.hbm [shape: f32[2,36], index: 0, kind: input, shape index: {}]
  %s1 = inlined_call_operand.hbm [shape: f32[36,120], index: 1, kind: input, shape index: {}]
  %s2 = inlined_call_operand.hbm [shape: f32[36,120], index: 2, kind: input, shape index: {}]
  %s3 = inlined_call_operand.hbm [shape: f32[120,64], index: 3, kind: input, shape index: {}]
  %s4 = inlined_call_operand.vmem [shape: f32[2,64], index: 4, kind: output, shape index: {}]
  %s5 = sld [smem:[#allocation0]]
  $region42: #{positive_definite_matrix.1} parent=0
    _
  %s7 = ssub.s32 1, %s5
  %s8 = scalar_select 0, %s7, %s5
  $region1: #{positive_definite_matrix.1} parent=0
    #allocation2 [shape = 'u8[1024]{0}', space=vmem, size = 0x400, scoped, tag = 'input window, operand 0, single buffered']
    #allocation3 [shape = 's32[1]{0}', space=sflag, size = 0x4, scoped, tag = 'scoped memory for positive_definite_matrix.1']
    #allocation4 [shape = 'u8[20480]{0}', space=vmem, size = 0x5000, scoped, tag = 'input window, operand 1, single buffered']
    #allocation5 [shape = 's32[1]{0}', space=sflag, size = 0x4, scoped, tag = 'scoped memory for positive_definite_matrix.1']
    #allocation6 [shape = 'u8[20480]{0}', space=vmem, size = 0x5000, scoped, tag = 'input window, operand 2, single buffered']
    #allocation7 [shape = 'u8[61440]{0}', space=vmem, size = 0xf000, scoped, tag = 'input window, operand 3, single buffered']
    #allocation8 [shape = 's32[1]{0}', space=sflag, size = 0x4, scoped, tag = 'scoped memory for positive_definite_matrix.1']
    %9 = vsyncpa [#allocation3], 0
    %10 = vsyncpa [#allocation5], 0
    %11 = vsyncpa [#allocation8], 0
    // Predicated region
    $region2: #{positive_definite_matrix.1} parent=1 // pred_check
      _
    $region3: #{positive_definite_matrix.1} parent=1 // pred_check_branch
      %13 = sbr.rel (0) target = $region5
    $region4: #{positive_definite_matrix.1} parent=1 // pred_region
      %s15 = ssub.s32 32, 32
      %16 = vsyncadd [#allocation3], %s15
      %s18 = sshll.u32 [#allocation2], 4
      %s19 = int_to_ptr.vmem [resolvable:$true] %s18
      %21 = dma.hbm_to_vmem [thread:$0]  %s0, 32, %s19, [#allocation3]
    $region5: #{positive_definite_matrix.1} parent=1 // pred_fallthru
      _
    // Predicated region
    $region6: #{positive_definite_matrix.1} parent=1 // pred_check
      _
    $region7: #{positive_definite_matrix.1} parent=1 // pred_check_branch
      %23 = sbr.rel (0) target = $region9
    $region8: #{positive_definite_matrix.1} parent=1 // pred_region
      %s25 = ssub.s32 640, 640
      %26 = vsyncadd [#allocation5], %s25
      %s27 = sshll.u32 [#allocation4], 4
      %s28 = int_to_ptr.vmem [resolvable:$true] %s27
      %33 = dma.hbm_to_vmem [thread:$0]  %s1, 640, %s28, [#allocation5], 128, 128, 8
    $region9: #{positive_definite_matrix.1} parent=1 // pred_fallthru
      _
    // Predicated region
    $region10: #{positive_definite_matrix.1} parent=1 // pred_check
      _
    $region11: #{positive_definite_matrix.1} parent=1 // pred_check_branch
      %35 = sbr.rel (0) target = $region13
    $region12: #{positive_definite_matrix.1} parent=1 // pred_region
      %s37 = ssub.s32 640, 640
      %38 = vsyncadd [#allocation5], %s37
      %s39 = sshll.u32 [#allocation6], 4
      %s40 = int_to_ptr.vmem [resolvable:$true] %s39
      %45 = dma.hbm_to_vmem [thread:$0]  %s2, 640, %s40, [#allocation5], 128, 128, 8
    $region13: #{positive_definite_matrix.1} parent=1 // pred_fallthru
      _
    // Predicated region
    $region14: #{positive_definite_matrix.1} parent=1 // pred_check
      _
    $region15: #{positive_definite_matrix.1} parent=1 // pred_check_branch
      %47 = sbr.rel (0) target = $region17
    $region16: #{positive_definite_matrix.1} parent=1 // pred_region
      %s49 = ssub.s32 1920, 1920
      %50 = vsyncadd [#allocation8], %s49
      %s51 = sshll.u32 [#allocation7], 4
      %s52 = int_to_ptr.vmem [resolvable:$true] %s51
      %57 = dma.hbm_to_vmem [thread:$0]  %s3, 1920, %s52, [#allocation8], 128, 128, 8
    $region17: #{positive_definite_matrix.1} parent=1 // pred_fallthru
      _
    // Predicated region
    $region18: #{positive_definite_matrix.1} parent=1 // pred_check
      _
    $region19: #{positive_definite_matrix.1} parent=1 // pred_check_branch
      %59 = sbr.rel (0) target = $region21
    $region20: #{positive_definite_matrix.1} parent=1 // pred_region
      %60 = dma.done [#allocation3], 32
    $region21: #{positive_definite_matrix.1} parent=1 // pred_fallthru
      _
    // Predicated region
    $region22: #{positive_definite_matrix.1} parent=1 // pred_check
      _
    $region23: #{positive_definite_matrix.1} parent=1 // pred_check_branch
      %62 = sbr.rel (0) target = $region25
    $region24: #{positive_definite_matrix.1} parent=1 // pred_region
      %63 = dma.done [#allocation5], 640
    $region25: #{positive_definite_matrix.1} parent=1 // pred_fallthru
      _
    // Predicated region
    $region26: #{positive_definite_matrix.1} parent=1 // pred_check
      _
    $region27: #{positive_definite_matrix.1} parent=1 // pred_check_branch
      %65 = sbr.rel (0) target = $region29
    $region28: #{positive_definite_matrix.1} parent=1 // pred_region
      %66 = dma.done [#allocation5], 640
    $region29: #{positive_definite_matrix.1} parent=1 // pred_fallthru
      _
    // Predicated region
    $region30: #{positive_definite_matrix.1} parent=1 // pred_check
      _
    $region31: #{positive_definite_matrix.1} parent=1 // pred_check_branch
      %68 = sbr.rel (0) target = $region33
    $region32: #{positive_definite_matrix.1} parent=1 // pred_region
      %69 = dma.done [#allocation8], 1920
    $region33: #{positive_definite_matrix.1} parent=1 // pred_fallthru
      _
    %v70 = vld [vmem:[#allocation2] sm:$0x3]
    %v71 = vlaneseq
    %v72 = vand.u32 %v71, 127
    %vm73 = vcmp.eq.s32.totalorder %v72, 0
    %vm74 = vcmp.eq.s32.totalorder %v72, 2
    %vm75 = vmor %vm73, %vm74
    %vm76 = vcmp.eq.s32.totalorder %v72, 5
    %vm77 = vmor %vm75, %vm76
    %vm78 = vcmp.eq.s32.totalorder %v72, 9
    %vm79 = vmor %vm77, %vm78
    %vm80 = vcmp.eq.s32.totalorder %v72, 14
    %vm81 = vmor %vm79, %vm80
    %vm82 = vcmp.eq.s32.totalorder %v72, 20
    %vm83 = vmor %vm81, %vm82
    %vm84 = vcmp.eq.s32.totalorder %v72, 27
    %vm85 = vmor %vm83, %vm84
    %vm86 = vcmp.eq.s32.totalorder %v72, 35
    %vm87 = vmor %vm85, %vm86
    %v88 = vmax.f32 %v70, 0.0
    %v89 = vsub.f32 0.0, %v70
    %vm90 = vcmp.ne.f32.partialorder %v89, %v89
    %v91 = vadd.f32 %v70, 0.0
    %v92 = vand.u32 2147483647, %v89
    %v93 = vsub.f32 0.0, %v92
    %v94 = vmul.f32 %v93, 1.442695
    %v95 = vpow.pop %v94
    %v96 = vadd.f32 %v95, 1.0
    %v97 = vlog2.pop %v96
    %v98 = vmul.f32 %v97, 0.6931472
    %v99 = vmul.f32 -0.5, %v95
    %v100 = vadd.f32 %v99, 1.0
    %v101 = vmul.f32 %v100, %v95
    %v102 = vand.u32 2147483647, %v95
    %vm103 = vcmp.lt.f32.partialorder %v102, 0.0004427343
    %v104 = vsel %vm103, %v101, %v98
    %v105 = vadd.f32 %v88, %v104
    %v106 = vsel %vm90, %v91, %v105
    %v107 = vsel %vm87, %v106, %v70
    %v108 = vld [vmem:[#allocation4] sm:$0xff]
    %v109 = vld [vmem:[#allocation4 + $0x8] sm:$0xff]
    %v110 = vld [vmem:[#allocation4 + $0x10] sm:$0xff]
    %v111 = vld [vmem:[#allocation4 + $0x18] sm:$0xff]
    %v112 = vld [vmem:[#allocation4 + $0x20] sm:$0xf]
    %vm113 = vcmask 293888
    %v115 = vsel %vm113, %v107, 0
    %vm117 = vcmask 1043456
    %v119 = vsel %vm117, %v112, 0
    %121 = vmatprep.subr.mxu0 0.0
    %v122 = vand.u32 %v108, 4294901760
    %123 = vmatpush1.msra.mxu0 %v122
    %124 = vmatprep.subr.mxu0 0.0
    %v125 = vand.u32 %v109, 4294901760
    %126 = vmatpush1.msra.mxu0 %v125
    %127 = vmatprep.subr.mxu0 0.0
    %v128 = vand.u32 %v110, 4294901760
    %129 = vmatpush1.msra.mxu0 %v128
    %130 = vmatprep.subr.mxu0 0.0
    %v131 = vand.u32 %v111, 4294901760
    %132 = vmatpush1.msra.mxu0 %v131
    %133 = vmatprep.subr.mxu0 0.0
    %v134 = vand.u32 %v119, 4294901760
    %135 = vmatpush1.msra.mxu0 %v134
    %136 = vmatprep.subr.mxu0 0.0
    %137 = vmatpush1.msra.mxu0 0.0
    %138 = vmatprep.subr.mxu0 0.0
    %139 = vmatpush1.msra.mxu0 0.0
    %140 = vmatprep.subr.mxu0 0.0
    %141 = vmatpush1.msra.mxu0 0.0
    %142 = vmatprep.subr.mxu0 0.0
    %143 = vmatpush1.msra.mxu0 0.0
    %144 = vmatprep.subr.mxu0 0.0
    %145 = vmatpush1.msra.mxu0 0.0
    %146 = vmatprep.subr.mxu0 0.0
    %147 = vmatpush1.msra.mxu0 0.0
    %148 = vmatprep.subr.mxu0 0.0
    %149 = vmatpush1.msra.mxu0 0.0
    %150 = vmatprep.subr.mxu0 0.0
    %151 = vmatpush1.msra.mxu0 0.0
    %152 = vmatprep.subr.mxu0 0.0
    %153 = vmatpush1.msra.mxu0 0.0
    %154 = vmatprep.subr.mxu0 0.0
    %155 = vmatpush1.msra.mxu0 0.0
    %156 = vmatprep.subr.mxu0 0.0
    %157 = vmatpush1.msra.mxu0 0.0
    %158 = vmatprep.subr.mxu0 0.0
    %159 = vmatpush1.msra.mxu0 0.0
    %160 = vmatprep.subr.mxu0 0.0
    %161 = vmatpush1.msra.mxu0 0.0
    %162 = vmatprep.subr.mxu0 0.0
    %163 = vmatpush1.msra.mxu0 0.0
    %164 = vmatprep.subr.mxu0 0.0
    %165 = vmatpush1.msra.mxu0 0.0
    %166 = vmatprep.subr.mxu0 0.0
    %167 = vmatpush1.msra.mxu0 0.0
    %168 = vmatprep.subr.mxu0 0.0
    %169 = vmatpush1.msra.mxu0 0.0
    %170 = vmatprep.subr.mxu0 0.0
    %171 = vmatpush1.msra.mxu0 0.0
    %172 = vmatprep.subr.mxu0 0.0
    %173 = vmatpush1.msra.mxu0 0.0
    %174 = vmatprep.subr.mxu0 0.0
    %175 = vmatpush1.msra.mxu0 0.0
    %176 = vmatprep.subr.mxu0 0.0
    %177 = vmatpush1.msra.mxu0 0.0
    %178 = vmatprep.subr.mxu0 0.0
    %179 = vmatpush1.msra.mxu0 0.0
    %180 = vmatprep.subr.mxu0 0.0
    %181 = vmatpush1.msra.mxu0 0.0
    %182 = vmatprep.subr.mxu0 0.0
    %183 = vmatpush1.msra.mxu0 0.0
    %184 = vmatprep.subr.mxu0 0.0
    %185 = vmatpush1.msra.mxu0 0.0
    %186 = vmatprep.subr.mxu0 0.0
    %187 = vmatpush1.msra.mxu0 0.0
    %188 = vmatprep.subr.mxu0 0.0
    %189 = vmatpush1.msra.mxu0 0.0
    %190 = vmatprep.mubr.f32.mxu0 0.0
    %v191 = vand.u32 %v115, 4294901760
    %v192 = vsub.f32 %v115, %v191
    %v193 = vand.u32 %v192, 4294901760
    %v194 = vsub.f32 %v192, %v193
    %v195 = vand.u32 %v194, 4294901760
    %196 = vmatmul.mubr.f32.gmra.mrb[0].mxu0 %v195
    %v197 = vpop.f32.mrb[0].mxu0
    %v198 = vadd.f32 0.0, %v197
    %v199 = vpop.f32.mrb[0].mxu0
    %200 = vdwg.mxu0
    %201 = vmatprep.subr.mxu0 0.0
    %v202 = vand.u32 %v108, 4294901760
    %v203 = vsub.f32 %v108, %v202
    %v204 = vand.u32 %v203, 4294901760
    %v205 = vsub.f32 %v203, %v204
    %v206 = vand.u32 %v205, 4294901760
    %207 = vmatpush1.msra.mxu0 %v206
    %208 = vmatprep.subr.mxu0 0.0
    %v209 = vand.u32 %v109, 4294901760
    %v210 = vsub.f32 %v109, %v209
    %v211 = vand.u32 %v210, 4294901760
    %v212 = vsub.f32 %v210, %v211
    %v213 = vand.u32 %v212, 4294901760
    %214 = vmatpush1.msra.mxu0 %v213
    %215 = vmatprep.subr.mxu0 0.0
    %v216 = vand.u32 %v110, 4294901760
    %v217 = vsub.f32 %v110, %v216
    %v218 = vand.u32 %v217, 4294901760
    %v219 = vsub.f32 %v217, %v218
    %v220 = vand.u32 %v219, 4294901760
    %221 = vmatpush1.msra.mxu0 %v220
    %222 = vmatprep.subr.mxu0 0.0
    %v223 = vand.u32 %v111, 4294901760
    %v224 = vsub.f32 %v111, %v223
    %v225 = vand.u32 %v224, 4294901760
    %v226 = vsub.f32 %v224, %v225
    %v227 = vand.u32 %v226, 4294901760
    %228 = vmatpush1.msra.mxu0 %v227
    %229 = vmatprep.subr.mxu0 0.0
    %v230 = vand.u32 %v119, 4294901760
    %v231 = vsub.f32 %v119, %v230
    %v232 = vand.u32 %v231, 4294901760
    %v233 = vsub.f32 %v231, %v232
    %v234 = vand.u32 %v233, 4294901760
    %235 = vmatpush1.msra.mxu0 %v234
    %236 = vmatprep.subr.mxu0 0.0
    %237 = vmatpush1.msra.mxu0 0.0
    %238 = vmatprep.subr.mxu0 0.0
    %239 = vmatpush1.msra.mxu0 0.0
    %240 = vmatprep.subr.mxu0 0.0
    %241 = vmatpush1.msra.mxu0 0.0
    %242 = vmatprep.subr.mxu0 0.0
    %243 = vmatpush1.msra.mxu0 0.0
    %244 = vmatprep.subr.mxu0 0.0
    %245 = vmatpush1.msra.mxu0 0.0
    %246 = vmatprep.subr.mxu0 0.0
    %247 = vmatpush1.msra.mxu0 0.0
    %248 = vmatprep.subr.mxu0 0.0
    %249 = vmatpush1.msra.mxu0 0.0
    %250 = vmatprep.subr.mxu0 0.0
    %251 = vmatpush1.msra.mxu0 0.0
    %252 = vmatprep.subr.mxu0 0.0
    %253 = vmatpush1.msra.mxu0 0.0
    %254 = vmatprep.subr.mxu0 0.0
    %255 = vmatpush1.msra.mxu0 0.0
    %256 = vmatprep.subr.mxu0 0.0
    %257 = vmatpush1.msra.mxu0 0.0
    %258 = vmatprep.subr.mxu0 0.0
    %259 = vmatpush1.msra.mxu0 0.0
    %260 = vmatprep.subr.mxu0 0.0
    %261 = vmatpush1.msra.mxu0 0.0
    %262 = vmatprep.subr.mxu0 0.0
    %263 = vmatpush1.msra.mxu0 0.0
    %264 = vmatprep.subr.mxu0 0.0
    %265 = vmatpush1.msra.mxu0 0.0
    %266 = vmatprep.subr.mxu0 0.0
    %267 = vmatpush1.msra.mxu0 0.0
    %268 = vmatprep.subr.mxu0 0.0
    %269 = vmatpush1.msra.mxu0 0.0
    %270 = vmatprep.subr.mxu0 0.0
    %271 = vmatpush1.msra.mxu0 0.0
    %272 = vmatprep.subr.mxu0 0.0
    %273 = vmatpush1.msra.mxu0 0.0
    %274 = vmatprep.subr.mxu0 0.0
    %275 = vmatpush1.msra.mxu0 0.0
    %276 = vmatprep.subr.mxu0 0.0
    %277 = vmatpush1.msra.mxu0 0.0
    %278 = vmatprep.subr.mxu0 0.0
    %279 = vmatpush1.msra.mxu0 0.0
    %280 = vmatprep.subr.mxu0 0.0
    %281 = vmatpush1.msra.mxu0 0.0
    %282 = vmatprep.subr.mxu0 0.0
    %283 = vmatpush1.msra.mxu0 0.0
    %284 = vmatprep.subr.mxu0 0.0
    %285 = vmatpush1.msra.mxu0 0.0
    %286 = vmatprep.subr.mxu0 0.0
    %287 = vmatpush1.msra.mxu0 0.0
    %288 = vmatprep.subr.mxu0 0.0
    %289 = vmatpush1.msra.mxu0 0.0
    %290 = vmatprep.mubr.f32.mxu0 0.0
    %v291 = vand.u32 %v115, 4294901760
    %292 = vmatmul.mubr.f32.gmra.mrb[0].mxu0 %v291
    %v293 = vpop.f32.mrb[0].mxu0
    %v294 = vadd.f32 %v198, %v293
    %v295 = vpop.f32.mrb[0].mxu0
    %296 = vdwg.mxu0
    %297 = vmatprep.subr.mxu0 0.0
    %v298 = vand.u32 %v108, 4294901760
    %v299 = vsub.f32 %v108, %v298
    %300 = vmatpush1.msra.mxu0 %v299
    %301 = vmatprep.subr.mxu0 0.0
    %v302 = vand.u32 %v109, 4294901760
    %v303 = vsub.f32 %v109, %v302
    %304 = vmatpush1.msra.mxu0 %v303
    %305 = vmatprep.subr.mxu0 0.0
    %v306 = vand.u32 %v110, 4294901760
    %v307 = vsub.f32 %v110, %v306
    %308 = vmatpush1.msra.mxu0 %v307
    %309 = vmatprep.subr.mxu0 0.0
    %v310 = vand.u32 %v111, 4294901760
    %v311 = vsub.f32 %v111, %v310
    %312 = vmatpush1.msra.mxu0 %v311
    %313 = vmatprep.subr.mxu0 0.0
    %v314 = vand.u32 %v119, 4294901760
    %v315 = vsub.f32 %v119, %v314
    %316 = vmatpush1.msra.mxu0 %v315
    %317 = vmatprep.subr.mxu0 0.0
    %318 = vmatpush1.msra.mxu0 0.0
    %319 = vmatprep.subr.mxu0 0.0
    %320 = vmatpush1.msra.mxu0 0.0
    %321 = vmatprep.subr.mxu0 0.0
    %322 = vmatpush1.msra.mxu0 0.0
    %323 = vmatprep.subr.mxu0 0.0
    %324 = vmatpush1.msra.mxu0 0.0
    %325 = vmatprep.subr.mxu0 0.0
    %326 = vmatpush1.msra.mxu0 0.0
    %327 = vmatprep.subr.mxu0 0.0
    %328 = vmatpush1.msra.mxu0 0.0
    %329 = vmatprep.subr.mxu0 0.0
    %330 = vmatpush1.msra.mxu0 0.0
    %331 = vmatprep.subr.mxu0 0.0
    %332 = vmatpush1.msra.mxu0 0.0
    %333 = vmatprep.subr.mxu0 0.0
    %334 = vmatpush1.msra.mxu0 0.0
    %335 = vmatprep.subr.mxu0 0.0
    %336 = vmatpush1.msra.mxu0 0.0
    %337 = vmatprep.subr.mxu0 0.0
    %338 = vmatpush1.msra.mxu0 0.0
    %339 = vmatprep.subr.mxu0 0.0
    %340 = vmatpush1.msra.mxu0 0.0
    %341 = vmatprep.subr.mxu0 0.0
    %342 = vmatpush1.msra.mxu0 0.0
    %343 = vmatprep.subr.mxu0 0.0
    %344 = vmatpush1.msra.mxu0 0.0
    %345 = vmatprep.subr.mxu0 0.0
    %346 = vmatpush1.msra.mxu0 0.0
    %347 = vmatprep.subr.mxu0 0.0
    %348 = vmatpush1.msra.mxu0 0.0
    %349 = vmatprep.subr.mxu0 0.0
    %350 = vmatpush1.msra.mxu0 0.0
    %351 = vmatprep.subr.mxu0 0.0
    %352 = vmatpush1.msra.mxu0 0.0
    %353 = vmatprep.subr.mxu0 0.0
    %354 = vmatpush1.msra.mxu0 0.0
    %355 = vmatprep.subr.mxu0 0.0
    %356 = vmatpush1.msra.mxu0 0.0
    %357 = vmatprep.subr.mxu0 0.0
    %358 = vmatpush1.msra.mxu0 0.0
    %359 = vmatprep.subr.mxu0 0.0
    %360 = vmatpush1.msra.mxu0 0.0
    %361 = vmatprep.subr.mxu0 0.0
    %362 = vmatpush1.msra.mxu0 0.0
    %363 = vmatprep.subr.mxu0 0.0
    %364 = vmatpush1.msra.mxu0 0.0
    %365 = vmatprep.subr.mxu0 0.0
    %366 = vmatpush1.msra.mxu0 0.0
    %367 = vmatprep.subr.mxu0 0.0
    %368 = vmatpush1.msra.mxu0 0.0
    %369 = vmatprep.subr.mxu0 0.0
    %370 = vmatpush1.msra.mxu0 0.0
    %371 = vmatprep.mubr.f32.mxu0 0.0
    %v372 = vand.u32 %v115, 4294901760
    %v373 = vsub.f32 %v115, %v372
    %374 = vmatmul.mubr.f32.gmra.mrb[0].mxu0 %v373
    %v375 = vpop.f32.mrb[0].mxu0
    %v376 = vadd.f32 %v294, %v375
    %v377 = vpop.f32.mrb[0].mxu0
    %378 = vdwg.mxu0
    %379 = vmatprep.subr.mxu0 0.0
    %v380 = vand.u32 %v108, 4294901760
    %381 = vmatpush1.msra.mxu0 %v380
    %382 = vmatprep.subr.mxu0 0.0
    %v383 = vand.u32 %v109, 4294901760
    %384 = vmatpush1.msra.mxu0 %v383
    %385 = vmatprep.subr.mxu0 0.0
    %v386 = vand.u32 %v110, 4294901760
    %387 = vmatpush1.msra.mxu0 %v386
    %388 = vmatprep.subr.mxu0 0.0
    %v389 = vand.u32 %v111, 4294901760
    %390 = vmatpush1.msra.mxu0 %v389
    %391 = vmatprep.subr.mxu0 0.0
    %v392 = vand.u32 %v119, 4294901760
    %393 = vmatpush1.msra.mxu0 %v392
    %394 = vmatprep.subr.mxu0 0.0
    %395 = vmatpush1.msra.mxu0 0.0
    %396 = vmatprep.subr.mxu0 0.0
    %397 = vmatpush1.msra.mxu0 0.0
    %398 = vmatprep.subr.mxu0 0.0
    %399 = vmatpush1.msra.mxu0 0.0
    %400 = vmatprep.subr.mxu0 0.0
    %401 = vmatpush1.msra.mxu0 0.0
    %402 = vmatprep.subr.mxu0 0.0
    %403 = vmatpush1.msra.mxu0 0.0
    %404 = vmatprep.subr.mxu0 0.0
    %405 = vmatpush1.msra.mxu0 0.0
    %406 = vmatprep.subr.mxu0 0.0
    %407 = vmatpush1.msra.mxu0 0.0
    %408 = vmatprep.subr.mxu0 0.0
    %409 = vmatpush1.msra.mxu0 0.0
    %410 = vmatprep.subr.mxu0 0.0
    %411 = vmatpush1.msra.mxu0 0.0
    %412 = vmatprep.subr.mxu0 0.0
    %413 = vmatpush1.msra.mxu0 0.0
    %414 = vmatprep.subr.mxu0 0.0
    %415 = vmatpush1.msra.mxu0 0.0
    %416 = vmatprep.subr.mxu0 0.0
    %417 = vmatpush1.msra.mxu0 0.0
    %418 = vmatprep.subr.mxu0 0.0
    %419 = vmatpush1.msra.mxu0 0.0
    %420 = vmatprep.subr.mxu0 0.0
    %421 = vmatpush1.msra.mxu0 0.0
    %422 = vmatprep.subr.mxu0 0.0
    %423 = vmatpush1.msra.mxu0 0.0
    %424 = vmatprep.subr.mxu0 0.0
    %425 = vmatpush1.msra.mxu0 0.0
    %426 = vmatprep.subr.mxu0 0.0
    %427 = vmatpush1.msra.mxu0 0.0
    %428 = vmatprep.subr.mxu0 0.0
    %429 = vmatpush1.msra.mxu0 0.0
    %430 = vmatprep.subr.mxu0 0.0
    %431 = vmatpush1.msra.mxu0 0.0
    %432 = vmatprep.subr.mxu0 0.0
    %433 = vmatpush1.msra.mxu0 0.0
    %434 = vmatprep.subr.mxu0 0.0
    %435 = vmatpush1.msra.mxu0 0.0
    %436 = vmatprep.subr.mxu0 0.0
    %437 = vmatpush1.msra.mxu0 0.0
    %438 = vmatprep.subr.mxu0 0.0
    %439 = vmatpush1.msra.mxu0 0.0
    %440 = vmatprep.subr.mxu0 0.0
    %441 = vmatpush1.msra.mxu0 0.0
    %442 = vmatprep.subr.mxu0 0.0
    %443 = vmatpush1.msra.mxu0 0.0
    %444 = vmatprep.subr.mxu0 0.0
    %445 = vmatpush1.msra.mxu0 0.0
    %446 = vmatprep.subr.mxu0 0.0
    %447 = vmatpush1.msra.mxu0 0.0
    %448 = vmatprep.mubr.f32.mxu0 0.0
    %v449 = vand.u32 %v115, 4294901760
    %v450 = vsub.f32 %v115, %v449
    %v451 = vand.u32 %v450, 4294901760
    %452 = vmatmul.mubr.f32.gmra.mrb[0].mxu0 %v451
    %v453 = vpop.f32.mrb[0].mxu0
    %v454 = vadd.f32 %v376, %v453
    %v455 = vpop.f32.mrb[0].mxu0
    %456 = vdwg.mxu0
    %457 = vmatprep.subr.mxu0 0.0
    %v458 = vand.u32 %v108, 4294901760
    %v459 = vsub.f32 %v108, %v458
    %v460 = vand.u32 %v459, 4294901760
    %461 = vmatpush1.msra.mxu0 %v460
    %462 = vmatprep.subr.mxu0 0.0
    %v463 = vand.u32 %v109, 4294901760
    %v464 = vsub.f32 %v109, %v463
    %v465 = vand.u32 %v464, 4294901760
    %466 = vmatpush1.msra.mxu0 %v465
    %467 = vmatprep.subr.mxu0 0.0
    %v468 = vand.u32 %v110, 4294901760
    %v469 = vsub.f32 %v110, %v468
    %v470 = vand.u32 %v469, 4294901760
    %471 = vmatpush1.msra.mxu0 %v470
    %472 = vmatprep.subr.mxu0 0.0
    %v473 = vand.u32 %v111, 4294901760
    %v474 = vsub.f32 %v111, %v473
    %v475 = vand.u32 %v474, 4294901760
    %476 = vmatpush1.msra.mxu0 %v475
    %477 = vmatprep.subr.mxu0 0.0
    %v478 = vand.u32 %v119, 4294901760
    %v479 = vsub.f32 %v119, %v478
    %v480 = vand.u32 %v479, 4294901760
    %481 = vmatpush1.msra.mxu0 %v480
    %482 = vmatprep.subr.mxu0 0.0
    %483 = vmatpush1.msra.mxu0 0.0
    %484 = vmatprep.subr.mxu0 0.0
    %485 = vmatpush1.msra.mxu0 0.0
    %486 = vmatprep.subr.mxu0 0.0
    %487 = vmatpush1.msra.mxu0 0.0
    %488 = vmatprep.subr.mxu0 0.0
    %489 = vmatpush1.msra.mxu0 0.0
    %490 = vmatprep.subr.mxu0 0.0
    %491 = vmatpush1.msra.mxu0 0.0
    %492 = vmatprep.subr.mxu0 0.0
    %493 = vmatpush1.msra.mxu0 0.0
    %494 = vmatprep.subr.mxu0 0.0
    %495 = vmatpush1.msra.mxu0 0.0
    %496 = vmatprep.subr.mxu0 0.0
    %497 = vmatpush1.msra.mxu0 0.0
    %498 = vmatprep.subr.mxu0 0.0
    %499 = vmatpush1.msra.mxu0 0.0
    %500 = vmatprep.subr.mxu0 0.0
    %501 = vmatpush1.msra.mxu0 0.0
    %502 = vmatprep.subr.mxu0 0.0
    %503 = vmatpush1.msra.mxu0 0.0
    %504 = vmatprep.subr.mxu0 0.0
    %505 = vmatpush1.msra.mxu0 0.0
    %506 = vmatprep.subr.mxu0 0.0
    %507 = vmatpush1.msra.mxu0 0.0
    %508 = vmatprep.subr.mxu0 0.0
    %509 = vmatpush1.msra.mxu0 0.0
    %510 = vmatprep.subr.mxu0 0.0
    %511 = vmatpush1.msra.mxu0 0.0
    %512 = vmatprep.subr.mxu0 0.0
    %513 = vmatpush1.msra.mxu0 0.0
    %514 = vmatprep.subr.mxu0 0.0
    %515 = vmatpush1.msra.mxu0 0.0
    %516 = vmatprep.subr.mxu0 0.0
    %517 = vmatpush1.msra.mxu0 0.0
    %518 = vmatprep.subr.mxu0 0.0
    %519 = vmatpush1.msra.mxu0 0.0
    %520 = vmatprep.subr.mxu0 0.0
    %521 = vmatpush1.msra.mxu0 0.0
    %522 = vmatprep.subr.mxu0 0.0
    %523 = vmatpush1.msra.mxu0 0.0
    %524 = vmatprep.subr.mxu0 0.0
    %525 = vmatpush1.msra.mxu0 0.0
    %526 = vmatprep.subr.mxu0 0.0
    %527 = vmatpush1.msra.mxu0 0.0
    %528 = vmatprep.subr.mxu0 0.0
    %529 = vmatpush1.msra.mxu0 0.0
    %530 = vmatprep.subr.mxu0 0.0
    %531 = vmatpush1.msra.mxu0 0.0
    %532 = vmatprep.subr.mxu0 0.0
    %533 = vmatpush1.msra.mxu0 0.0
    %534 = vmatprep.subr.mxu0 0.0
    %535 = vmatpush1.msra.mxu0 0.0
    %536 = vmatprep.mubr.f32.mxu0 0.0
    %v537 = vand.u32 %v115, 4294901760
    %538 = vmatmul.mubr.f32.gmra.mrb[0].mxu0 %v537
    %v539 = vpop.f32.mrb[0].mxu0
    %v540 = vadd.f32 %v454, %v539
    %v541 = vpop.f32.mrb[0].mxu0
    %542 = vdwg.mxu0
    %543 = vmatprep.subr.mxu0 0.0
    %v544 = vand.u32 %v108, 4294901760
    %545 = vmatpush1.msra.mxu0 %v544
    %546 = vmatprep.subr.mxu0 0.0
    %v547 = vand.u32 %v109, 4294901760
    %548 = vmatpush1.msra.mxu0 %v547
    %549 = vmatprep.subr.mxu0 0.0
    %v550 = vand.u32 %v110, 4294901760
    %551 = vmatpush1.msra.mxu0 %v550
    %552 = vmatprep.subr.mxu0 0.0
    %v553 = vand.u32 %v111, 4294901760
    %554 = vmatpush1.msra.mxu0 %v553
    %555 = vmatprep.subr.mxu0 0.0
    %v556 = vand.u32 %v119, 4294901760
    %557 = vmatpush1.msra.mxu0 %v556
    %558 = vmatprep.subr.mxu0 0.0
    %559 = vmatpush1.msra.mxu0 0.0
    %560 = vmatprep.subr.mxu0 0.0
    %561 = vmatpush1.msra.mxu0 0.0
    %562 = vmatprep.subr.mxu0 0.0
    %563 = vmatpush1.msra.mxu0 0.0
    %564 = vmatprep.subr.mxu0 0.0
    %565 = vmatpush1.msra.mxu0 0.0
    %566 = vmatprep.subr.mxu0 0.0
    %567 = vmatpush1.msra.mxu0 0.0
    %568 = vmatprep.subr.mxu0 0.0
    %569 = vmatpush1.msra.mxu0 0.0
    %570 = vmatprep.subr.mxu0 0.0
    %571 = vmatpush1.msra.mxu0 0.0
    %572 = vmatprep.subr.mxu0 0.0
    %573 = vmatpush1.msra.mxu0 0.0
    %574 = vmatprep.subr.mxu0 0.0
    %575 = vmatpush1.msra.mxu0 0.0
    %576 = vmatprep.subr.mxu0 0.0
    %577 = vmatpush1.msra.mxu0 0.0
    %578 = vmatprep.subr.mxu0 0.0
    %579 = vmatpush1.msra.mxu0 0.0
    %580 = vmatprep.subr.mxu0 0.0
    %581 = vmatpush1.msra.mxu0 0.0
    %582 = vmatprep.subr.mxu0 0.0
    %583 = vmatpush1.msra.mxu0 0.0
    %584 = vmatprep.subr.mxu0 0.0
    %585 = vmatpush1.msra.mxu0 0.0
    %586 = vmatprep.subr.mxu0 0.0
    %587 = vmatpush1.msra.mxu0 0.0
    %588 = vmatprep.subr.mxu0 0.0
    %589 = vmatpush1.msra.mxu0 0.0
    %590 = vmatprep.subr.mxu0 0.0
    %591 = vmatpush1.msra.mxu0 0.0
    %592 = vmatprep.subr.mxu0 0.0
    %593 = vmatpush1.msra.mxu0 0.0
    %594 = vmatprep.subr.mxu0 0.0
    %595 = vmatpush1.msra.mxu0 0.0
    %596 = vmatprep.subr.mxu0 0.0
    %597 = vmatpush1.msra.mxu0 0.0
    %598 = vmatprep.subr.mxu0 0.0
    %599 = vmatpush1.msra.mxu0 0.0
    %600 = vmatprep.subr.mxu0 0.0
    %601 = vmatpush1.msra.mxu0 0.0
    %602 = vmatprep.subr.mxu0 0.0
    %603 = vmatpush1.msra.mxu0 0.0
    %604 = vmatprep.subr.mxu0 0.0
    %605 = vmatpush1.msra.mxu0 0.0
    %606 = vmatprep.subr.mxu0 0.0
    %607 = vmatpush1.msra.mxu0 0.0
    %608 = vmatprep.subr.mxu0 0.0
    %609 = vmatpush1.msra.mxu0 0.0
    %610 = vmatprep.subr.mxu0 0.0
    %611 = vmatpush1.msra.mxu0 0.0
    %612 = vmatprep.mubr.f32.mxu0 0.0
    %v613 = vand.u32 %v115, 4294901760
    %614 = vmatmul.mubr.f32.gmra.mrb[0].mxu0 %v613
    %v615 = vpop.f32.mrb[0].mxu0
    %v616 = vadd.f32 %v540, %v615
    %v617 = vpop.f32.mrb[0].mxu0
    %618 = vdwg.mxu0
    %v619 = vld [vmem:[#allocation6] sm:$0xff]
    %v620 = vld [vmem:[#allocation6 + $0x8] sm:$0xff]
    %v621 = vld [vmem:[#allocation6 + $0x10] sm:$0xff]
    %v622 = vld [vmem:[#allocation6 + $0x18] sm:$0xff]
    %v623 = vld [vmem:[#allocation6 + $0x20] sm:$0xf]
    %v625 = vsel %vm117, %v623, 0
    %627 = vmatprep.subr.mxu0 0.0
    %v628 = vand.u32 %v619, 4294901760
    %629 = vmatpush1.msra.mxu0 %v628
    %630 = vmatprep.subr.mxu0 0.0
    %v631 = vand.u32 %v620, 4294901760
    %632 = vmatpush1.msra.mxu0 %v631
    %633 = vmatprep.subr.mxu0 0.0
    %v634 = vand.u32 %v621, 4294901760
    %635 = vmatpush1.msra.mxu0 %v634
    %636 = vmatprep.subr.mxu0 0.0
    %v637 = vand.u32 %v622, 4294901760
    %638 = vmatpush1.msra.mxu0 %v637
    %639 = vmatprep.subr.mxu0 0.0
    %v640 = vand.u32 %v625, 4294901760
    %641 = vmatpush1.msra.mxu0 %v640
    %642 = vmatprep.subr.mxu0 0.0
    %643 = vmatpush1.msra.mxu0 0.0
    %644 = vmatprep.subr.mxu0 0.0
    %645 = vmatpush1.msra.mxu0 0.0
    %646 = vmatprep.subr.mxu0 0.0
    %647 = vmatpush1.msra.mxu0 0.0
    %648 = vmatprep.subr.mxu0 0.0
    %649 = vmatpush1.msra.mxu0 0.0
    %650 = vmatprep.subr.mxu0 0.0
    %651 = vmatpush1.msra.mxu0 0.0
    %652 = vmatprep.subr.mxu0 0.0
    %653 = vmatpush1.msra.mxu0 0.0
    %654 = vmatprep.subr.mxu0 0.0
    %655 = vmatpush1.msra.mxu0 0.0
    %656 = vmatprep.subr.mxu0 0.0
    %657 = vmatpush1.msra.mxu0 0.0
    %658 = vmatprep.subr.mxu0 0.0
    %659 = vmatpush1.msra.mxu0 0.0
    %660 = vmatprep.subr.mxu0 0.0
    %661 = vmatpush1.msra.mxu0 0.0
    %662 = vmatprep.subr.mxu0 0.0
    %663 = vmatpush1.msra.mxu0 0.0
    %664 = vmatprep.subr.mxu0 0.0
    %665 = vmatpush1.msra.mxu0 0.0
    %666 = vmatprep.subr.mxu0 0.0
    %667 = vmatpush1.msra.mxu0 0.0
    %668 = vmatprep.subr.mxu0 0.0
    %669 = vmatpush1.msra.mxu0 0.0
    %670 = vmatprep.subr.mxu0 0.0
    %671 = vmatpush1.msra.mxu0 0.0
    %672 = vmatprep.subr.mxu0 0.0
    %673 = vmatpush1.msra.mxu0 0.0
    %674 = vmatprep.subr.mxu0 0.0
    %675 = vmatpush1.msra.mxu0 0.0
    %676 = vmatprep.subr.mxu0 0.0
    %677 = vmatpush1.msra.mxu0 0.0
    %678 = vmatprep.subr.mxu0 0.0
    %679 = vmatpush1.msra.mxu0 0.0
    %680 = vmatprep.subr.mxu0 0.0
    %681 = vmatpush1.msra.mxu0 0.0
    %682 = vmatprep.subr.mxu0 0.0
    %683 = vmatpush1.msra.mxu0 0.0
    %684 = vmatprep.subr.mxu0 0.0
    %685 = vmatpush1.msra.mxu0 0.0
    %686 = vmatprep.subr.mxu0 0.0
    %687 = vmatpush1.msra.mxu0 0.0
    %688 = vmatprep.subr.mxu0 0.0
    %689 = vmatpush1.msra.mxu0 0.0
    %690 = vmatprep.subr.mxu0 0.0
    %691 = vmatpush1.msra.mxu0 0.0
    %692 = vmatprep.subr.mxu0 0.0
    %693 = vmatpush1.msra.mxu0 0.0
    %694 = vmatprep.subr.mxu0 0.0
    %695 = vmatpush1.msra.mxu0 0.0
    %696 = vmatprep.mubr.f32.mxu0 0.0
    %v697 = vand.u32 %v115, 4294901760
    %v698 = vsub.f32 %v115, %v697
    %v699 = vand.u32 %v698, 4294901760
    %v700 = vsub.f32 %v698, %v699
    %v701 = vand.u32 %v700, 4294901760
    %702 = vmatmul.mubr.f32.gmra.mrb[0].mxu0 %v701
    %v703 = vpop.f32.mrb[0].mxu0
    %v704 = vadd.f32 0.0, %v703
    %v705 = vpop.f32.mrb[0].mxu0
    %706 = vdwg.mxu0
    %707 = vmatprep.subr.mxu0 0.0
    %v708 = vand.u32 %v619, 4294901760
    %v709 = vsub.f32 %v619, %v708
    %v710 = vand.u32 %v709, 4294901760
    %v711 = vsub.f32 %v709, %v710
    %v712 = vand.u32 %v711, 4294901760
    %713 = vmatpush1.msra.mxu0 %v712
    %714 = vmatprep.subr.mxu0 0.0
    %v715 = vand.u32 %v620, 4294901760
    %v716 = vsub.f32 %v620, %v715
    %v717 = vand.u32 %v716, 4294901760
    %v718 = vsub.f32 %v716, %v717
    %v719 = vand.u32 %v718, 4294901760
    %720 = vmatpush1.msra.mxu0 %v719
    %721 = vmatprep.subr.mxu0 0.0
    %v722 = vand.u32 %v621, 4294901760
    %v723 = vsub.f32 %v621, %v722
    %v724 = vand.u32 %v723, 4294901760
    %v725 = vsub.f32 %v723, %v724
    %v726 = vand.u32 %v725, 4294901760
    %727 = vmatpush1.msra.mxu0 %v726
    %728 = vmatprep.subr.mxu0 0.0
    %v729 = vand.u32 %v622, 4294901760
    %v730 = vsub.f32 %v622, %v729
    %v731 = vand.u32 %v730, 4294901760
    %v732 = vsub.f32 %v730, %v731
    %v733 = vand.u32 %v732, 4294901760
    %734 = vmatpush1.msra.mxu0 %v733
    %735 = vmatprep.subr.mxu0 0.0
    %v736 = vand.u32 %v625, 4294901760
    %v737 = vsub.f32 %v625, %v736
    %v738 = vand.u32 %v737, 4294901760
    %v739 = vsub.f32 %v737, %v738
    %v740 = vand.u32 %v739, 4294901760
    %741 = vmatpush1.msra.mxu0 %v740
    %742 = vmatprep.subr.mxu0 0.0
    %743 = vmatpush1.msra.mxu0 0.0
    %744 = vmatprep.subr.mxu0 0.0
    %745 = vmatpush1.msra.mxu0 0.0
    %746 = vmatprep.subr.mxu0 0.0
    %747 = vmatpush1.msra.mxu0 0.0
    %748 = vmatprep.subr.mxu0 0.0
    %749 = vmatpush1.msra.mxu0 0.0
    %750 = vmatprep.subr.mxu0 0.0
    %751 = vmatpush1.msra.mxu0 0.0
    %752 = vmatprep.subr.mxu0 0.0
    %753 = vmatpush1.msra.mxu0 0.0
    %754 = vmatprep.subr.mxu0 0.0
    %755 = vmatpush1.msra.mxu0 0.0
    %756 = vmatprep.subr.mxu0 0.0
    %757 = vmatpush1.msra.mxu0 0.0
    %758 = vmatprep.subr.mxu0 0.0
    %759 = vmatpush1.msra.mxu0 0.0
    %760 = vmatprep.subr.mxu0 0.0
    %761 = vmatpush1.msra.mxu0 0.0
    %762 = vmatprep.subr.mxu0 0.0
    %763 = vmatpush1.msra.mxu0 0.0
    %764 = vmatprep.subr.mxu0 0.0
    %765 = vmatpush1.msra.mxu0 0.0
    %766 = vmatprep.subr.mxu0 0.0
    %767 = vmatpush1.msra.mxu0 0.0
    %768 = vmatprep.subr.mxu0 0.0
    %769 = vmatpush1.msra.mxu0 0.0
    %770 = vmatprep.subr.mxu0 0.0
    %771 = vmatpush1.msra.mxu0 0.0
    %772 = vmatprep.subr.mxu0 0.0
    %773 = vmatpush1.msra.mxu0 0.0
    %774 = vmatprep.subr.mxu0 0.0
    %775 = vmatpush1.msra.mxu0 0.0
    %776 = vmatprep.subr.mxu0 0.0
    %777 = vmatpush1.msra.mxu0 0.0
    %778 = vmatprep.subr.mxu0 0.0
    %779 = vmatpush1.msra.mxu0 0.0
    %780 = vmatprep.subr.mxu0 0.0
    %781 = vmatpush1.msra.mxu0 0.0
    %782 = vmatprep.subr.mxu0 0.0
    %783 = vmatpush1.msra.mxu0 0.0
    %784 = vmatprep.subr.mxu0 0.0
    %785 = vmatpush1.msra.mxu0 0.0
    %786 = vmatprep.subr.mxu0 0.0
    %787 = vmatpush1.msra.mxu0 0.0
    %788 = vmatprep.subr.mxu0 0.0
    %789 = vmatpush1.msra.mxu0 0.0
    %790 = vmatprep.subr.mxu0 0.0
    %791 = vmatpush1.msra.mxu0 0.0
    %792 = vmatprep.subr.mxu0 0.0
    %793 = vmatpush1.msra.mxu0 0.0
    %794 = vmatprep.subr.mxu0 0.0
    %795 = vmatpush1.msra.mxu0 0.0
    %796 = vmatprep.mubr.f32.mxu0 0.0
    %v797 = vand.u32 %v115, 4294901760
    %798 = vmatmul.mubr.f32.gmra.mrb[0].mxu0 %v797
    %v799 = vpop.f32.mrb[0].mxu0
    %v800 = vadd.f32 %v704, %v799
    %v801 = vpop.f32.mrb[0].mxu0
    %802 = vdwg.mxu0
    %803 = vmatprep.subr.mxu0 0.0
    %v804 = vand.u32 %v619, 4294901760
    %v805 = vsub.f32 %v619, %v804
    %806 = vmatpush1.msra.mxu0 %v805
    %807 = vmatprep.subr.mxu0 0.0
    %v808 = vand.u32 %v620, 4294901760
    %v809 = vsub.f32 %v620, %v808
    %810 = vmatpush1.msra.mxu0 %v809
    %811 = vmatprep.subr.mxu0 0.0
    %v812 = vand.u32 %v621, 4294901760
    %v813 = vsub.f32 %v621, %v812
    %814 = vmatpush1.msra.mxu0 %v813
    %815 = vmatprep.subr.mxu0 0.0
    %v816 = vand.u32 %v622, 4294901760
    %v817 = vsub.f32 %v622, %v816
    %818 = vmatpush1.msra.mxu0 %v817
    %819 = vmatprep.subr.mxu0 0.0
    %v820 = vand.u32 %v625, 4294901760
    %v821 = vsub.f32 %v625, %v820
    %822 = vmatpush1.msra.mxu0 %v821
    %823 = vmatprep.subr.mxu0 0.0
    %824 = vmatpush1.msra.mxu0 0.0
    %825 = vmatprep.subr.mxu0 0.0
    %826 = vmatpush1.msra.mxu0 0.0
    %827 = vmatprep.subr.mxu0 0.0
    %828 = vmatpush1.msra.mxu0 0.0
    %829 = vmatprep.subr.mxu0 0.0
    %830 = vmatpush1.msra.mxu0 0.0
    %831 = vmatprep.subr.mxu0 0.0
    %832 = vmatpush1.msra.mxu0 0.0
    %833 = vmatprep.subr.mxu0 0.0
    %834 = vmatpush1.msra.mxu0 0.0
    %835 = vmatprep.subr.mxu0 0.0
    %836 = vmatpush1.msra.mxu0 0.0
    %837 = vmatprep.subr.mxu0 0.0
    %838 = vmatpush1.msra.mxu0 0.0
    %839 = vmatprep.subr.mxu0 0.0
    %840 = vmatpush1.msra.mxu0 0.0
    %841 = vmatprep.subr.mxu0 0.0
    %842 = vmatpush1.msra.mxu0 0.0
    %843 = vmatprep.subr.mxu0 0.0
    %844 = vmatpush1.msra.mxu0 0.0
    %845 = vmatprep.subr.mxu0 0.0
    %846 = vmatpush1.msra.mxu0 0.0
    %847 = vmatprep.subr.mxu0 0.0
    %848 = vmatpush1.msra.mxu0 0.0
    %849 = vmatprep.subr.mxu0 0.0
    %850 = vmatpush1.msra.mxu0 0.0
    %851 = vmatprep.subr.mxu0 0.0
    %852 = vmatpush1.msra.mxu0 0.0
    %853 = vmatprep.subr.mxu0 0.0
    %854 = vmatpush1.msra.mxu0 0.0
    %855 = vmatprep.subr.mxu0 0.0
    %856 = vmatpush1.msra.mxu0 0.0
    %857 = vmatprep.subr.mxu0 0.0
    %858 = vmatpush1.msra.mxu0 0.0
    %859 = vmatprep.subr.mxu0 0.0
    %860 = vmatpush1.msra.mxu0 0.0
    %861 = vmatprep.subr.mxu0 0.0
    %862 = vmatpush1.msra.mxu0 0.0
    %863 = vmatprep.subr.mxu0 0.0
    %864 = vmatpush1.msra.mxu0 0.0
    %865 = vmatprep.subr.mxu0 0.0
    %866 = vmatpush1.msra.mxu0 0.0
    %867 = vmatprep.subr.mxu0 0.0
    %868 = vmatpush1.msra.mxu0 0.0
    %869 = vmatprep.subr.mxu0 0.0
    %870 = vmatpush1.msra.mxu0 0.0
    %871 = vmatprep.subr.mxu0 0.0
    %872 = vmatpush1.msra.mxu0 0.0
    %873 = vmatprep.subr.mxu0 0.0
    %874 = vmatpush1.msra.mxu0 0.0
    %875 = vmatprep.subr.mxu0 0.0
    %876 = vmatpush1.msra.mxu0 0.0
    %877 = vmatprep.mubr.f32.mxu0 0.0
    %v878 = vand.u32 %v115, 4294901760
    %v879 = vsub.f32 %v115, %v878
    %880 = vmatmul.mubr.f32.gmra.mrb[0].mxu0 %v879
    %v881 = vpop.f32.mrb[0].mxu0
    %v882 = vadd.f32 %v800, %v881
    %v883 = vpop.f32.mrb[0].mxu0
    %884 = vdwg.mxu0
    %885 = vmatprep.subr.mxu0 0.0
    %v886 = vand.u32 %v619, 4294901760
    %887 = vmatpush1.msra.mxu0 %v886
    %888 = vmatprep.subr.mxu0 0.0
    %v889 = vand.u32 %v620, 4294901760
    %890 = vmatpush1.msra.mxu0 %v889
    %891 = vmatprep.subr.mxu0 0.0
    %v892 = vand.u32 %v621, 4294901760
    %893 = vmatpush1.msra.mxu0 %v892
    %894 = vmatprep.subr.mxu0 0.0
    %v895 = vand.u32 %v622, 4294901760
    %896 = vmatpush1.msra.mxu0 %v895
    %897 = vmatprep.subr.mxu0 0.0
    %v898 = vand.u32 %v625, 4294901760
    %899 = vmatpush1.msra.mxu0 %v898
    %900 = vmatprep.subr.mxu0 0.0
    %901 = vmatpush1.msra.mxu0 0.0
    %902 = vmatprep.subr.mxu0 0.0
    %903 = vmatpush1.msra.mxu0 0.0
    %904 = vmatprep.subr.mxu0 0.0
    %905 = vmatpush1.msra.mxu0 0.0
    %906 = vmatprep.subr.mxu0 0.0
    %907 = vmatpush1.msra.mxu0 0.0
    %908 = vmatprep.subr.mxu0 0.0
    %909 = vmatpush1.msra.mxu0 0.0
    %910 = vmatprep.subr.mxu0 0.0
    %911 = vmatpush1.msra.mxu0 0.0
    %912 = vmatprep.subr.mxu0 0.0
    %913 = vmatpush1.msra.mxu0 0.0
    %914 = vmatprep.subr.mxu0 0.0
    %915 = vmatpush1.msra.mxu0 0.0
    %916 = vmatprep.subr.mxu0 0.0
    %917 = vmatpush1.msra.mxu0 0.0
    %918 = vmatprep.subr.mxu0 0.0
    %919 = vmatpush1.msra.mxu0 0.0
    %920 = vmatprep.subr.mxu0 0.0
    %921 = vmatpush1.msra.mxu0 0.0
    %922 = vmatprep.subr.mxu0 0.0
    %923 = vmatpush1.msra.mxu0 0.0
    %924 = vmatprep.subr.mxu0 0.0
    %925 = vmatpush1.msra.mxu0 0.0
    %926 = vmatprep.subr.mxu0 0.0
    %927 = vmatpush1.msra.mxu0 0.0
    %928 = vmatprep.subr.mxu0 0.0
    %929 = vmatpush1.msra.mxu0 0.0
    %930 = vmatprep.subr.mxu0 0.0
    %931 = vmatpush1.msra.mxu0 0.0
    %932 = vmatprep.subr.mxu0 0.0
    %933 = vmatpush1.msra.mxu0 0.0
    %934 = vmatprep.subr.mxu0 0.0
    %935 = vmatpush1.msra.mxu0 0.0
    %936 = vmatprep.subr.mxu0 0.0
    %937 = vmatpush1.msra.mxu0 0.0
    %938 = vmatprep.subr.mxu0 0.0
    %939 = vmatpush1.msra.mxu0 0.0
    %940 = vmatprep.subr.mxu0 0.0
    %941 = vmatpush1.msra.mxu0 0.0
    %942 = vmatprep.subr.mxu0 0.0
    %943 = vmatpush1.msra.mxu0 0.0
    %944 = vmatprep.subr.mxu0 0.0
    %945 = vmatpush1.msra.mxu0 0.0
    %946 = vmatprep.subr.mxu0 0.0
    %947 = vmatpush1.msra.mxu0 0.0
    %948 = vmatprep.subr.mxu0 0.0
    %949 = vmatpush1.msra.mxu0 0.0
    %950 = vmatprep.subr.mxu0 0.0
    %951 = vmatpush1.msra.mxu0 0.0
    %952 = vmatprep.subr.mxu0 0.0
    %953 = vmatpush1.msra.mxu0 0.0
    %954 = vmatprep.mubr.f32.mxu0 0.0
    %v955 = vand.u32 %v115, 4294901760
    %v956 = vsub.f32 %v115, %v955
    %v957 = vand.u32 %v956, 4294901760
    %958 = vmatmul.mubr.f32.gmra.mrb[0].mxu0 %v957
    %v959 = vpop.f32.mrb[0].mxu0
    %v960 = vadd.f32 %v882, %v959
    %v961 = vpop.f32.mrb[0].mxu0
    %962 = vdwg.mxu0
    %963 = vmatprep.subr.mxu0 0.0
    %v964 = vand.u32 %v619, 4294901760
    %v965 = vsub.f32 %v619, %v964
    %v966 = vand.u32 %v965, 4294901760
    %967 = vmatpush1.msra.mxu0 %v966
    %968 = vmatprep.subr.mxu0 0.0
    %v969 = vand.u32 %v620, 4294901760
    %v970 = vsub.f32 %v620, %v969
    %v971 = vand.u32 %v970, 4294901760
    %972 = vmatpush1.msra.mxu0 %v971
    %973 = vmatprep.subr.mxu0 0.0
    %v974 = vand.u32 %v621, 4294901760
    %v975 = vsub.f32 %v621, %v974
    %v976 = vand.u32 %v975, 4294901760
    %977 = vmatpush1.msra.mxu0 %v976
    %978 = vmatprep.subr.mxu0 0.0
    %v979 = vand.u32 %v622, 4294901760
    %v980 = vsub.f32 %v622, %v979
    %v981 = vand.u32 %v980, 4294901760
    %982 = vmatpush1.msra.mxu0 %v981
    %983 = vmatprep.subr.mxu0 0.0
    %v984 = vand.u32 %v625, 4294901760
    %v985 = vsub.f32 %v625, %v984
    %v986 = vand.u32 %v985, 4294901760
    %987 = vmatpush1.msra.mxu0 %v986
    %988 = vmatprep.subr.mxu0 0.0
    %989 = vmatpush1.msra.mxu0 0.0
    %990 = vmatprep.subr.mxu0 0.0
    %991 = vmatpush1.msra.mxu0 0.0
    %992 = vmatprep.subr.mxu0 0.0
    %993 = vmatpush1.msra.mxu0 0.0
    %994 = vmatprep.subr.mxu0 0.0
    %995 = vmatpush1.msra.mxu0 0.0
    %996 = vmatprep.subr.mxu0 0.0
    %997 = vmatpush1.msra.mxu0 0.0
    %998 = vmatprep.subr.mxu0 0.0
    %999 = vmatpush1.msra.mxu0 0.0
    %1000 = vmatprep.subr.mxu0 0.0
    %1001 = vmatpush1.msra.mxu0 0.0
    %1002 = vmatprep.subr.mxu0 0.0
    %1003 = vmatpush1.msra.mxu0 0.0
    %1004 = vmatprep.subr.mxu0 0.0
    %1005 = vmatpush1.msra.mxu0 0.0
    %1006 = vmatprep.subr.mxu0 0.0
    %1007 = vmatpush1.msra.mxu0 0.0
    %1008 = vmatprep.subr.mxu0 0.0
    %1009 = vmatpush1.msra.mxu0 0.0
    %1010 = vmatprep.subr.mxu0 0.0
    %1011 = vmatpush1.msra.mxu0 0.0
    %1012 = vmatprep.subr.mxu0 0.0
    %1013 = vmatpush1.msra.mxu0 0.0
    %1014 = vmatprep.subr.mxu0 0.0
    %1015 = vmatpush1.msra.mxu0 0.0
    %1016 = vmatprep.subr.mxu0 0.0
    %1017 = vmatpush1.msra.mxu0 0.0
    %1018 = vmatprep.subr.mxu0 0.0
    %1019 = vmatpush1.msra.mxu0 0.0
    %1020 = vmatprep.subr.mxu0 0.0
    %1021 = vmatpush1.msra.mxu0 0.0
    %1022 = vmatprep.subr.mxu0 0.0
    %1023 = vmatpush1.msra.mxu0 0.0
    %1024 = vmatprep.subr.mxu0 0.0
    %1025 = vmatpush1.msra.mxu0 0.0
    %1026 = vmatprep.subr.mxu0 0.0
    %1027 = vmatpush1.msra.mxu0 0.0
    %1028 = vmatprep.subr.mxu0 0.0
    %1029 = vmatpush1.msra.mxu0 0.0
    %1030 = vmatprep.subr.mxu0 0.0
    %1031 = vmatpush1.msra.mxu0 0.0
    %1032 = vmatprep.subr.mxu0 0.0
    %1033 = vmatpush1.msra.mxu0 0.0
    %1034 = vmatprep.subr.mxu0 0.0
    %1035 = vmatpush1.msra.mxu0 0.0
    %1036 = vmatprep.subr.mxu0 0.0
    %1037 = vmatpush1.msra.mxu0 0.0
    %1038 = vmatprep.subr.mxu0 0.0
    %1039 = vmatpush1.msra.mxu0 0.0
    %1040 = vmatprep.subr.mxu0 0.0
    %1041 = vmatpush1.msra.mxu0 0.0
    %1042 = vmatprep.mubr.f32.mxu0 0.0
    %v1043 = vand.u32 %v115, 4294901760
    %1044 = vmatmul.mubr.f32.gmra.mrb[0].mxu0 %v1043
    %v1045 = vpop.f32.mrb[0].mxu0
    %v1046 = vadd.f32 %v960, %v1045
    %v1047 = vpop.f32.mrb[0].mxu0
    %1048 = vdwg.mxu0
    %1049 = vmatprep.subr.mxu0 0.0
    %v1050 = vand.u32 %v619, 4294901760
    %1051 = vmatpush1.msra.mxu0 %v1050
    %1052 = vmatprep.subr.mxu0 0.0
    %v1053 = vand.u32 %v620, 4294901760
    %1054 = vmatpush1.msra.mxu0 %v1053
    %1055 = vmatprep.subr.mxu0 0.0
    %v1056 = vand.u32 %v621, 4294901760
    %1057 = vmatpush1.msra.mxu0 %v1056
    %1058 = vmatprep.subr.mxu0 0.0
    %v1059 = vand.u32 %v622, 4294901760
    %1060 = vmatpush1.msra.mxu0 %v1059
    %1061 = vmatprep.subr.mxu0 0.0
    %v1062 = vand.u32 %v625, 4294901760
    %1063 = vmatpush1.msra.mxu0 %v1062
    %1064 = vmatprep.subr.mxu0 0.0
    %1065 = vmatpush1.msra.mxu0 0.0
    %1066 = vmatprep.subr.mxu0 0.0
    %1067 = vmatpush1.msra.mxu0 0.0
    %1068 = vmatprep.subr.mxu0 0.0
    %1069 = vmatpush1.msra.mxu0 0.0
    %1070 = vmatprep.subr.mxu0 0.0
    %1071 = vmatpush1.msra.mxu0 0.0
    %1072 = vmatprep.subr.mxu0 0.0
    %1073 = vmatpush1.msra.mxu0 0.0
    %1074 = vmatprep.subr.mxu0 0.0
    %1075 = vmatpush1.msra.mxu0 0.0
    %1076 = vmatprep.subr.mxu0 0.0
    %1077 = vmatpush1.msra.mxu0 0.0
    %1078 = vmatprep.subr.mxu0 0.0
    %1079 = vmatpush1.msra.mxu0 0.0
    %1080 = vmatprep.subr.mxu0 0.0
    %1081 = vmatpush1.msra.mxu0 0.0
    %1082 = vmatprep.subr.mxu0 0.0
    %1083 = vmatpush1.msra.mxu0 0.0
    %1084 = vmatprep.subr.mxu0 0.0
    %1085 = vmatpush1.msra.mxu0 0.0
    %1086 = vmatprep.subr.mxu0 0.0
    %1087 = vmatpush1.msra.mxu0 0.0
    %1088 = vmatprep.subr.mxu0 0.0
    %1089 = vmatpush1.msra.mxu0 0.0
    %1090 = vmatprep.subr.mxu0 0.0
    %1091 = vmatpush1.msra.mxu0 0.0
    %1092 = vmatprep.subr.mxu0 0.0
    %1093 = vmatpush1.msra.mxu0 0.0
    %1094 = vmatprep.subr.mxu0 0.0
    %1095 = vmatpush1.msra.mxu0 0.0
    %1096 = vmatprep.subr.mxu0 0.0
    %1097 = vmatpush1.msra.mxu0 0.0
    %1098 = vmatprep.subr.mxu0 0.0
    %1099 = vmatpush1.msra.mxu0 0.0
    %1100 = vmatprep.subr.mxu0 0.0
    %1101 = vmatpush1.msra.mxu0 0.0
    %1102 = vmatprep.subr.mxu0 0.0
    %1103 = vmatpush1.msra.mxu0 0.0
    %1104 = vmatprep.subr.mxu0 0.0
    %1105 = vmatpush1.msra.mxu0 0.0
    %1106 = vmatprep.subr.mxu0 0.0
    %1107 = vmatpush1.msra.mxu0 0.0
    %1108 = vmatprep.subr.mxu0 0.0
    %1109 = vmatpush1.msra.mxu0 0.0
    %1110 = vmatprep.subr.mxu0 0.0
    %1111 = vmatpush1.msra.mxu0 0.0
    %1112 = vmatprep.subr.mxu0 0.0
    %1113 = vmatpush1.msra.mxu0 0.0
    %1114 = vmatprep.subr.mxu0 0.0
    %1115 = vmatpush1.msra.mxu0 0.0
    %1116 = vmatprep.subr.mxu0 0.0
    %1117 = vmatpush1.msra.mxu0 0.0
    %1118 = vmatprep.mubr.f32.mxu0 0.0
    %v1119 = vand.u32 %v115, 4294901760
    %1120 = vmatmul.mubr.f32.gmra.mrb[0].mxu0 %v1119
    %v1121 = vpop.f32.mrb[0].mxu0
    %v1122 = vadd.f32 %v1046, %v1121
    %v1123 = vpop.f32.mrb[0].mxu0
    %1124 = vdwg.mxu0
    %v1125 = vmul.f32 %v616, %v1122
    %v1126 = vld [vmem:[#allocation7] sm:$0xff]
    %v1127 = vld [vmem:[#allocation7 + $0x8] sm:$0xff]
    %v1128 = vld [vmem:[#allocation7 + $0x10] sm:$0xff]
    %v1129 = vld [vmem:[#allocation7 + $0x18] sm:$0xff]
    %v1130 = vld [vmem:[#allocation7 + $0x20] sm:$0xff]
    %v1131 = vld [vmem:[#allocation7 + $0x28] sm:$0xff]
    %v1132 = vld [vmem:[#allocation7 + $0x30] sm:$0xff]
    %v1133 = vld [vmem:[#allocation7 + $0x38] sm:$0xff]
    %v1134 = vld [vmem:[#allocation7 + $0x40] sm:$0xff]
    %v1135 = vld [vmem:[#allocation7 + $0x48] sm:$0xff]
    %v1136 = vld [vmem:[#allocation7 + $0x50] sm:$0xff]
    %v1137 = vld [vmem:[#allocation7 + $0x58] sm:$0xff]
    %v1138 = vld [vmem:[#allocation7 + $0x60] sm:$0xff]
    %v1139 = vld [vmem:[#allocation7 + $0x68] sm:$0xff]
    %v1140 = vld [vmem:[#allocation7 + $0x70] sm:$0xff]
    %vm1141 = vmor %vm73, %vm78
    %vm1142 = vcmp.eq.s32.totalorder %v72, 18
    %vm1143 = vmor %vm1141, %vm1142
    %vm1144 = vmor %vm1143, %vm84
    %vm1145 = vcmp.eq.s32.totalorder %v72, 36
    %vm1146 = vmor %vm1144, %vm1145
    %vm1147 = vcmp.eq.s32.totalorder %v72, 45
    %vm1148 = vmor %vm1146, %vm1147
    %vm1149 = vcmp.eq.s32.totalorder %v72, 54
    %vm1150 = vmor %vm1148, %vm1149
    %vm1151 = vcmp.eq.s32.totalorder %v72, 63
    %vm1152 = vmor %vm1150, %vm1151
    %v1153 = vsel %vm1152, 1e-08, 0.0
    %vm1154 = vcmask 982016
    %v1156 = vsel %vm1154, %v1125, 0
    %1158 = vmatprep.subr.mxu0 0.0
    %v1159 = vand.u32 %v1126, 4294901760
    %1160 = vmatpush1.msra.mxu0 %v1159
    %1161 = vmatprep.subr.mxu0 0.0
    %v1162 = vand.u32 %v1127, 4294901760
    %1163 = vmatpush1.msra.mxu0 %v1162
    %1164 = vmatprep.subr.mxu0 0.0
    %v1165 = vand.u32 %v1128, 4294901760
    %1166 = vmatpush1.msra.mxu0 %v1165
    %1167 = vmatprep.subr.mxu0 0.0
    %v1168 = vand.u32 %v1129, 4294901760
    %1169 = vmatpush1.msra.mxu0 %v1168
    %1170 = vmatprep.subr.mxu0 0.0
    %v1171 = vand.u32 %v1130, 4294901760
    %1172 = vmatpush1.msra.mxu0 %v1171
    %1173 = vmatprep.subr.mxu0 0.0
    %v1174 = vand.u32 %v1131, 4294901760
    %1175 = vmatpush1.msra.mxu0 %v1174
    %1176 = vmatprep.subr.mxu0 0.0
    %v1177 = vand.u32 %v1132, 4294901760
    %1178 = vmatpush1.msra.mxu0 %v1177
    %1179 = vmatprep.subr.mxu0 0.0
    %v1180 = vand.u32 %v1133, 4294901760
    %1181 = vmatpush1.msra.mxu0 %v1180
    %1182 = vmatprep.subr.mxu0 0.0
    %v1183 = vand.u32 %v1134, 4294901760
    %1184 = vmatpush1.msra.mxu0 %v1183
    %1185 = vmatprep.subr.mxu0 0.0
    %v1186 = vand.u32 %v1135, 4294901760
    %1187 = vmatpush1.msra.mxu0 %v1186
    %1188 = vmatprep.subr.mxu0 0.0
    %v1189 = vand.u32 %v1136, 4294901760
    %1190 = vmatpush1.msra.mxu0 %v1189
    %1191 = vmatprep.subr.mxu0 0.0
    %v1192 = vand.u32 %v1137, 4294901760
    %1193 = vmatpush1.msra.mxu0 %v1192
    %1194 = vmatprep.subr.mxu0 0.0
    %v1195 = vand.u32 %v1138, 4294901760
    %1196 = vmatpush1.msra.mxu0 %v1195
    %1197 = vmatprep.subr.mxu0 0.0
    %v1198 = vand.u32 %v1139, 4294901760
    %1199 = vmatpush1.msra.mxu0 %v1198
    %1200 = vmatprep.subr.mxu0 0.0
    %v1201 = vand.u32 %v1140, 4294901760
    %1202 = vmatpush1.msra.mxu0 %v1201
    %1203 = vmatprep.subr.mxu0 0.0
    %1204 = vmatpush1.msra.mxu0 0.0
    %1205 = vmatprep.subr.mxu0 0.0
    %1206 = vmatpush1.msra.mxu0 0.0
    %1207 = vmatprep.subr.mxu0 0.0
    %1208 = vmatpush1.msra.mxu0 0.0
    %1209 = vmatprep.subr.mxu0 0.0
    %1210 = vmatpush1.msra.mxu0 0.0
    %1211 = vmatprep.subr.mxu0 0.0
    %1212 = vmatpush1.msra.mxu0 0.0
    %1213 = vmatprep.subr.mxu0 0.0
    %1214 = vmatpush1.msra.mxu0 0.0
    %1215 = vmatprep.subr.mxu0 0.0
    %1216 = vmatpush1.msra.mxu0 0.0
    %1217 = vmatprep.subr.mxu0 0.0
    %1218 = vmatpush1.msra.mxu0 0.0
    %1219 = vmatprep.subr.mxu0 0.0
    %1220 = vmatpush1.msra.mxu0 0.0
    %1221 = vmatprep.subr.mxu0 0.0
    %1222 = vmatpush1.msra.mxu0 0.0
    %1223 = vmatprep.subr.mxu0 0.0
    %1224 = vmatpush1.msra.mxu0 0.0
    %1225 = vmatprep.subr.mxu0 0.0
    %1226 = vmatpush1.msra.mxu0 0.0
    %1227 = vmatprep.subr.mxu0 0.0
    %1228 = vmatpush1.msra.mxu0 0.0
    %1229 = vmatprep.subr.mxu0 0.0
    %1230 = vmatpush1.msra.mxu0 0.0
    %1231 = vmatprep.subr.mxu0 0.0
    %1232 = vmatpush1.msra.mxu0 0.0
    %1233 = vmatprep.subr.mxu0 0.0
    %1234 = vmatpush1.msra.mxu0 0.0
    %1235 = vmatprep.subr.mxu0 0.0
    %1236 = vmatpush1.msra.mxu0 0.0
    %1237 = vmatprep.mubr.f32.mxu0 0.0
    %v1238 = vand.u32 %v1156, 4294901760
    %v1239 = vsub.f32 %v1156, %v1238
    %v1240 = vand.u32 %v1239, 4294901760
    %v1241 = vsub.f32 %v1239, %v1240
    %v1242 = vand.u32 %v1241, 4294901760
    %1243 = vmatmul.mubr.f32.gmra.mrb[0].mxu0 %v1242
    %v1244 = vpop.f32.mrb[0].mxu0
    %v1245 = vadd.f32 %v1153, %v1244
    %v1246 = vpop.f32.mrb[0].mxu0
    %1247 = vdwg.mxu0
    %1248 = vmatprep.subr.mxu0 0.0
    %v1249 = vand.u32 %v1126, 4294901760
    %v1250 = vsub.f32 %v1126, %v1249
    %v1251 = vand.u32 %v1250, 4294901760
    %v1252 = vsub.f32 %v1250, %v1251
    %v1253 = vand.u32 %v1252, 4294901760
    %1254 = vmatpush1.msra.mxu0 %v1253
    %1255 = vmatprep.subr.mxu0 0.0
    %v1256 = vand.u32 %v1127, 4294901760
    %v1257 = vsub.f32 %v1127, %v1256
    %v1258 = vand.u32 %v1257, 4294901760
    %v1259 = vsub.f32 %v1257, %v1258
    %v1260 = vand.u32 %v1259, 4294901760
    %1261 = vmatpush1.msra.mxu0 %v1260
    %1262 = vmatprep.subr.mxu0 0.0
    %v1263 = vand.u32 %v1128, 4294901760
    %v1264 = vsub.f32 %v1128, %v1263
    %v1265 = vand.u32 %v1264, 4294901760
    %v1266 = vsub.f32 %v1264, %v1265
    %v1267 = vand.u32 %v1266, 4294901760
    %1268 = vmatpush1.msra.mxu0 %v1267
    %1269 = vmatprep.subr.mxu0 0.0
    %v1270 = vand.u32 %v1129, 4294901760
    %v1271 = vsub.f32 %v1129, %v1270
    %v1272 = vand.u32 %v1271, 4294901760
    %v1273 = vsub.f32 %v1271, %v1272
    %v1274 = vand.u32 %v1273, 4294901760
    %1275 = vmatpush1.msra.mxu0 %v1274
    %1276 = vmatprep.subr.mxu0 0.0
    %v1277 = vand.u32 %v1130, 4294901760
    %v1278 = vsub.f32 %v1130, %v1277
    %v1279 = vand.u32 %v1278, 4294901760
    %v1280 = vsub.f32 %v1278, %v1279
    %v1281 = vand.u32 %v1280, 4294901760
    %1282 = vmatpush1.msra.mxu0 %v1281
    %1283 = vmatprep.subr.mxu0 0.0
    %v1284 = vand.u32 %v1131, 4294901760
    %v1285 = vsub.f32 %v1131, %v1284
    %v1286 = vand.u32 %v1285, 4294901760
    %v1287 = vsub.f32 %v1285, %v1286
    %v1288 = vand.u32 %v1287, 4294901760
    %1289 = vmatpush1.msra.mxu0 %v1288
    %1290 = vmatprep.subr.mxu0 0.0
    %v1291 = vand.u32 %v1132, 4294901760
    %v1292 = vsub.f32 %v1132, %v1291
    %v1293 = vand.u32 %v1292, 4294901760
    %v1294 = vsub.f32 %v1292, %v1293
    %v1295 = vand.u32 %v1294, 4294901760
    %1296 = vmatpush1.msra.mxu0 %v1295
    %1297 = vmatprep.subr.mxu0 0.0
    %v1298 = vand.u32 %v1133, 4294901760
    %v1299 = vsub.f32 %v1133, %v1298
    %v1300 = vand.u32 %v1299, 4294901760
    %v1301 = vsub.f32 %v1299, %v1300
    %v1302 = vand.u32 %v1301, 4294901760
    %1303 = vmatpush1.msra.mxu0 %v1302
    %1304 = vmatprep.subr.mxu0 0.0
    %v1305 = vand.u32 %v1134, 4294901760
    %v1306 = vsub.f32 %v1134, %v1305
    %v1307 = vand.u32 %v1306, 4294901760
    %v1308 = vsub.f32 %v1306, %v1307
    %v1309 = vand.u32 %v1308, 4294901760
    %1310 = vmatpush1.msra.mxu0 %v1309
    %1311 = vmatprep.subr.mxu0 0.0
    %v1312 = vand.u32 %v1135, 4294901760
    %v1313 = vsub.f32 %v1135, %v1312
    %v1314 = vand.u32 %v1313, 4294901760
    %v1315 = vsub.f32 %v1313, %v1314
    %v1316 = vand.u32 %v1315, 4294901760
    %1317 = vmatpush1.msra.mxu0 %v1316
    %1318 = vmatprep.subr.mxu0 0.0
    %v1319 = vand.u32 %v1136, 4294901760
    %v1320 = vsub.f32 %v1136, %v1319
    %v1321 = vand.u32 %v1320, 4294901760
    %v1322 = vsub.f32 %v1320, %v1321
    %v1323 = vand.u32 %v1322, 4294901760
    %1324 = vmatpush1.msra.mxu0 %v1323
    %1325 = vmatprep.subr.mxu0 0.0
    %v1326 = vand.u32 %v1137, 4294901760
    %v1327 = vsub.f32 %v1137, %v1326
    %v1328 = vand.u32 %v1327, 4294901760
    %v1329 = vsub.f32 %v1327, %v1328
    %v1330 = vand.u32 %v1329, 4294901760
    %1331 = vmatpush1.msra.mxu0 %v1330
    %1332 = vmatprep.subr.mxu0 0.0
    %v1333 = vand.u32 %v1138, 4294901760
    %v1334 = vsub.f32 %v1138, %v1333
    %v1335 = vand.u32 %v1334, 4294901760
    %v1336 = vsub.f32 %v1334, %v1335
    %v1337 = vand.u32 %v1336, 4294901760
    %1338 = vmatpush1.msra.mxu0 %v1337
    %1339 = vmatprep.subr.mxu0 0.0
    %v1340 = vand.u32 %v1139, 4294901760
    %v1341 = vsub.f32 %v1139, %v1340
    %v1342 = vand.u32 %v1341, 4294901760
    %v1343 = vsub.f32 %v1341, %v1342
    %v1344 = vand.u32 %v1343, 4294901760
    %1345 = vmatpush1.msra.mxu0 %v1344
    %1346 = vmatprep.subr.mxu0 0.0
    %v1347 = vand.u32 %v1140, 4294901760
    %v1348 = vsub.f32 %v1140, %v1347
    %v1349 = vand.u32 %v1348, 4294901760
    %v1350 = vsub.f32 %v1348, %v1349
    %v1351 = vand.u32 %v1350, 4294901760
    %1352 = vmatpush1.msra.mxu0 %v1351
    %1353 = vmatprep.subr.mxu0 0.0
    %1354 = vmatpush1.msra.mxu0 0.0
    %1355 = vmatprep.subr.mxu0 0.0
    %1356 = vmatpush1.msra.mxu0 0.0
    %1357 = vmatprep.subr.mxu0 0.0
    %1358 = vmatpush1.msra.mxu0 0.0
    %1359 = vmatprep.subr.mxu0 0.0
    %1360 = vmatpush1.msra.mxu0 0.0
    %1361 = vmatprep.subr.mxu0 0.0
    %1362 = vmatpush1.msra.mxu0 0.0
    %1363 = vmatprep.subr.mxu0 0.0
    %1364 = vmatpush1.msra.mxu0 0.0
    %1365 = vmatprep.subr.mxu0 0.0
    %1366 = vmatpush1.msra.mxu0 0.0
    %1367 = vmatprep.subr.mxu0 0.0
    %1368 = vmatpush1.msra.mxu0 0.0
    %1369 = vmatprep.subr.mxu0 0.0
    %1370 = vmatpush1.msra.mxu0 0.0
    %1371 = vmatprep.subr.mxu0 0.0
    %1372 = vmatpush1.msra.mxu0 0.0
    %1373 = vmatprep.subr.mxu0 0.0
    %1374 = vmatpush1.msra.mxu0 0.0
    %1375 = vmatprep.subr.mxu0 0.0
    %1376 = vmatpush1.msra.mxu0 0.0
    %1377 = vmatprep.subr.mxu0 0.0
    %1378 = vmatpush1.msra.mxu0 0.0
    %1379 = vmatprep.subr.mxu0 0.0
    %1380 = vmatpush1.msra.mxu0 0.0
    %1381 = vmatprep.subr.mxu0 0.0
    %1382 = vmatpush1.msra.mxu0 0.0
    %1383 = vmatprep.subr.mxu0 0.0
    %1384 = vmatpush1.msra.mxu0 0.0
    %1385 = vmatprep.subr.mxu0 0.0
    %1386 = vmatpush1.msra.mxu0 0.0
    %1387 = vmatprep.mubr.f32.mxu0 0.0
    %v1388 = vand.u32 %v1156, 4294901760
    %1389 = vmatmul.mubr.f32.gmra.mrb[0].mxu0 %v1388
    %v1390 = vpop.f32.mrb[0].mxu0
    %v1391 = vadd.f32 %v1245, %v1390
    %v1392 = vpop.f32.mrb[0].mxu0
    %1393 = vdwg.mxu0
    %1394 = vmatprep.subr.mxu0 0.0
    %v1395 = vand.u32 %v1126, 4294901760
    %v1396 = vsub.f32 %v1126, %v1395
    %1397 = vmatpush1.msra.mxu0 %v1396
    %1398 = vmatprep.subr.mxu0 0.0
    %v1399 = vand.u32 %v1127, 4294901760
    %v1400 = vsub.f32 %v1127, %v1399
    %1401 = vmatpush1.msra.mxu0 %v1400
    %1402 = vmatprep.subr.mxu0 0.0
    %v1403 = vand.u32 %v1128, 4294901760
    %v1404 = vsub.f32 %v1128, %v1403
    %1405 = vmatpush1.msra.mxu0 %v1404
    %1406 = vmatprep.subr.mxu0 0.0
    %v1407 = vand.u32 %v1129, 4294901760
    %v1408 = vsub.f32 %v1129, %v1407
    %1409 = vmatpush1.msra.mxu0 %v1408
    %1410 = vmatprep.subr.mxu0 0.0
    %v1411 = vand.u32 %v1130, 4294901760
    %v1412 = vsub.f32 %v1130, %v1411
    %1413 = vmatpush1.msra.mxu0 %v1412
    %1414 = vmatprep.subr.mxu0 0.0
    %v1415 = vand.u32 %v1131, 4294901760
    %v1416 = vsub.f32 %v1131, %v1415
    %1417 = vmatpush1.msra.mxu0 %v1416
    %1418 = vmatprep.subr.mxu0 0.0
    %v1419 = vand.u32 %v1132, 4294901760
    %v1420 = vsub.f32 %v1132, %v1419
    %1421 = vmatpush1.msra.mxu0 %v1420
    %1422 = vmatprep.subr.mxu0 0.0
    %v1423 = vand.u32 %v1133, 4294901760
    %v1424 = vsub.f32 %v1133, %v1423
    %1425 = vmatpush1.msra.mxu0 %v1424
    %1426 = vmatprep.subr.mxu0 0.0
    %v1427 = vand.u32 %v1134, 4294901760
    %v1428 = vsub.f32 %v1134, %v1427
    %1429 = vmatpush1.msra.mxu0 %v1428
    %1430 = vmatprep.subr.mxu0 0.0
    %v1431 = vand.u32 %v1135, 4294901760
    %v1432 = vsub.f32 %v1135, %v1431
    %1433 = vmatpush1.msra.mxu0 %v1432
    %1434 = vmatprep.subr.mxu0 0.0
    %v1435 = vand.u32 %v1136, 4294901760
    %v1436 = vsub.f32 %v1136, %v1435
    %1437 = vmatpush1.msra.mxu0 %v1436
    %1438 = vmatprep.subr.mxu0 0.0
    %v1439 = vand.u32 %v1137, 4294901760
    %v1440 = vsub.f32 %v1137, %v1439
    %1441 = vmatpush1.msra.mxu0 %v1440
    %1442 = vmatprep.subr.mxu0 0.0
    %v1443 = vand.u32 %v1138, 4294901760
    %v1444 = vsub.f32 %v1138, %v1443
    %1445 = vmatpush1.msra.mxu0 %v1444
    %1446 = vmatprep.subr.mxu0 0.0
    %v1447 = vand.u32 %v1139, 4294901760
    %v1448 = vsub.f32 %v1139, %v1447
    %1449 = vmatpush1.msra.mxu0 %v1448
    %1450 = vmatprep.subr.mxu0 0.0
    %v1451 = vand.u32 %v1140, 4294901760
    %v1452 = vsub.f32 %v1140, %v1451
    %1453 = vmatpush1.msra.mxu0 %v1452
    %1454 = vmatprep.subr.mxu0 0.0
    %1455 = vmatpush1.msra.mxu0 0.0
    %1456 = vmatprep.subr.mxu0 0.0
    %1457 = vmatpush1.msra.mxu0 0.0
    %1458 = vmatprep.subr.mxu0 0.0
    %1459 = vmatpush1.msra.mxu0 0.0
    %1460 = vmatprep.subr.mxu0 0.0
    %1461 = vmatpush1.msra.mxu0 0.0
    %1462 = vmatprep.subr.mxu0 0.0
    %1463 = vmatpush1.msra.mxu0 0.0
    %1464 = vmatprep.subr.mxu0 0.0
    %1465 = vmatpush1.msra.mxu0 0.0
    %1466 = vmatprep.subr.mxu0 0.0
    %1467 = vmatpush1.msra.mxu0 0.0
    %1468 = vmatprep.subr.mxu0 0.0
    %1469 = vmatpush1.msra.mxu0 0.0
    %1470 = vmatprep.subr.mxu0 0.0
    %1471 = vmatpush1.msra.mxu0 0.0
    %1472 = vmatprep.subr.mxu0 0.0
    %1473 = vmatpush1.msra.mxu0 0.0
    %1474 = vmatprep.subr.mxu0 0.0
    %1475 = vmatpush1.msra.mxu0 0.0
    %1476 = vmatprep.subr.mxu0 0.0
    %1477 = vmatpush1.msra.mxu0 0.0
    %1478 = vmatprep.subr.mxu0 0.0
    %1479 = vmatpush1.msra.mxu0 0.0
    %1480 = vmatprep.subr.mxu0 0.0
    %1481 = vmatpush1.msra.mxu0 0.0
    %1482 = vmatprep.subr.mxu0 0.0
    %1483 = vmatpush1.msra.mxu0 0.0
    %1484 = vmatprep.subr.mxu0 0.0
    %1485 = vmatpush1.msra.mxu0 0.0
    %1486 = vmatprep.subr.mxu0 0.0
    %1487 = vmatpush1.msra.mxu0 0.0
    %1488 = vmatprep.mubr.f32.mxu0 0.0
    %v1489 = vand.u32 %v1156, 4294901760
    %v1490 = vsub.f32 %v1156, %v1489
    %1491 = vmatmul.mubr.f32.gmra.mrb[0].mxu0 %v1490
    %v1492 = vpop.f32.mrb[0].mxu0
    %v1493 = vadd.f32 %v1391, %v1492
    %v1494 = vpop.f32.mrb[0].mxu0
    %1495 = vdwg.mxu0
    %1496 = vmatprep.subr.mxu0 0.0
    %v1497 = vand.u32 %v1126, 4294901760
    %1498 = vmatpush1.msra.mxu0 %v1497
    %1499 = vmatprep.subr.mxu0 0.0
    %v1500 = vand.u32 %v1127, 4294901760
    %1501 = vmatpush1.msra.mxu0 %v1500
    %1502 = vmatprep.subr.mxu0 0.0
    %v1503 = vand.u32 %v1128, 4294901760
    %1504 = vmatpush1.msra.mxu0 %v1503
    %1505 = vmatprep.subr.mxu0 0.0
    %v1506 = vand.u32 %v1129, 4294901760
    %1507 = vmatpush1.msra.mxu0 %v1506
    %1508 = vmatprep.subr.mxu0 0.0
    %v1509 = vand.u32 %v1130, 4294901760
    %1510 = vmatpush1.msra.mxu0 %v1509
    %1511 = vmatprep.subr.mxu0 0.0
    %v1512 = vand.u32 %v1131, 4294901760
    %1513 = vmatpush1.msra.mxu0 %v1512
    %1514 = vmatprep.subr.mxu0 0.0
    %v1515 = vand.u32 %v1132, 4294901760
    %1516 = vmatpush1.msra.mxu0 %v1515
    %1517 = vmatprep.subr.mxu0 0.0
    %v1518 = vand.u32 %v1133, 4294901760
    %1519 = vmatpush1.msra.mxu0 %v1518
    %1520 = vmatprep.subr.mxu0 0.0
    %v1521 = vand.u32 %v1134, 4294901760
    %1522 = vmatpush1.msra.mxu0 %v1521
    %1523 = vmatprep.subr.mxu0 0.0
    %v1524 = vand.u32 %v1135, 4294901760
    %1525 = vmatpush1.msra.mxu0 %v1524
    %1526 = vmatprep.subr.mxu0 0.0
    %v1527 = vand.u32 %v1136, 4294901760
    %1528 = vmatpush1.msra.mxu0 %v1527
    %1529 = vmatprep.subr.mxu0 0.0
    %v1530 = vand.u32 %v1137, 4294901760
    %1531 = vmatpush1.msra.mxu0 %v1530
    %1532 = vmatprep.subr.mxu0 0.0
    %v1533 = vand.u32 %v1138, 4294901760
    %1534 = vmatpush1.msra.mxu0 %v1533
    %1535 = vmatprep.subr.mxu0 0.0
    %v1536 = vand.u32 %v1139, 4294901760
    %1537 = vmatpush1.msra.mxu0 %v1536
    %1538 = vmatprep.subr.mxu0 0.0
    %v1539 = vand.u32 %v1140, 4294901760
    %1540 = vmatpush1.msra.mxu0 %v1539
    %1541 = vmatprep.subr.mxu0 0.0
    %1542 = vmatpush1.msra.mxu0 0.0
    %1543 = vmatprep.subr.mxu0 0.0
    %1544 = vmatpush1.msra.mxu0 0.0
    %1545 = vmatprep.subr.mxu0 0.0
    %1546 = vmatpush1.msra.mxu0 0.0
    %1547 = vmatprep.subr.mxu0 0.0
    %1548 = vmatpush1.msra.mxu0 0.0
    %1549 = vmatprep.subr.mxu0 0.0
    %1550 = vmatpush1.msra.mxu0 0.0
    %1551 = vmatprep.subr.mxu0 0.0
    %1552 = vmatpush1.msra.mxu0 0.0
    %1553 = vmatprep.subr.mxu0 0.0
    %1554 = vmatpush1.msra.mxu0 0.0
    %1555 = vmatprep.subr.mxu0 0.0
    %1556 = vmatpush1.msra.mxu0 0.0
    %1557 = vmatprep.subr.mxu0 0.0
    %1558 = vmatpush1.msra.mxu0 0.0
    %1559 = vmatprep.subr.mxu0 0.0
    %1560 = vmatpush1.msra.mxu0 0.0
    %1561 = vmatprep.subr.mxu0 0.0
    %1562 = vmatpush1.msra.mxu0 0.0
    %1563 = vmatprep.subr.mxu0 0.0
    %1564 = vmatpush1.msra.mxu0 0.0
    %1565 = vmatprep.subr.mxu0 0.0
    %1566 = vmatpush1.msra.mxu0 0.0
    %1567 = vmatprep.subr.mxu0 0.0
    %1568 = vmatpush1.msra.mxu0 0.0
    %1569 = vmatprep.subr.mxu0 0.0
    %1570 = vmatpush1.msra.mxu0 0.0
    %1571 = vmatprep.subr.mxu0 0.0
    %1572 = vmatpush1.msra.mxu0 0.0
    %1573 = vmatprep.subr.mxu0 0.0
    %1574 = vmatpush1.msra.mxu0 0.0
    %1575 = vmatprep.mubr.f32.mxu0 0.0
    %v1576 = vand.u32 %v1156, 4294901760
    %v1577 = vsub.f32 %v1156, %v1576
    %v1578 = vand.u32 %v1577, 4294901760
    %1579 = vmatmul.mubr.f32.gmra.mrb[0].mxu0 %v1578
    %v1580 = vpop.f32.mrb[0].mxu0
    %v1581 = vadd.f32 %v1493, %v1580
    %v1582 = vpop.f32.mrb[0].mxu0
    %1583 = vdwg.mxu0
    %1584 = vmatprep.subr.mxu0 0.0
    %v1585 = vand.u32 %v1126, 4294901760
    %v1586 = vsub.f32 %v1126, %v1585
    %v1587 = vand.u32 %v1586, 4294901760
    %1588 = vmatpush1.msra.mxu0 %v1587
    %1589 = vmatprep.subr.mxu0 0.0
    %v1590 = vand.u32 %v1127, 4294901760
    %v1591 = vsub.f32 %v1127, %v1590
    %v1592 = vand.u32 %v1591, 4294901760
    %1593 = vmatpush1.msra.mxu0 %v1592
    %1594 = vmatprep.subr.mxu0 0.0
    %v1595 = vand.u32 %v1128, 4294901760
    %v1596 = vsub.f32 %v1128, %v1595
    %v1597 = vand.u32 %v1596, 4294901760
    %1598 = vmatpush1.msra.mxu0 %v1597
    %1599 = vmatprep.subr.mxu0 0.0
    %v1600 = vand.u32 %v1129, 4294901760
    %v1601 = vsub.f32 %v1129, %v1600
    %v1602 = vand.u32 %v1601, 4294901760
    %1603 = vmatpush1.msra.mxu0 %v1602
    %1604 = vmatprep.subr.mxu0 0.0
    %v1605 = vand.u32 %v1130, 4294901760
    %v1606 = vsub.f32 %v1130, %v1605
    %v1607 = vand.u32 %v1606, 4294901760
    %1608 = vmatpush1.msra.mxu0 %v1607
    %1609 = vmatprep.subr.mxu0 0.0
    %v1610 = vand.u32 %v1131, 4294901760
    %v1611 = vsub.f32 %v1131, %v1610
    %v1612 = vand.u32 %v1611, 4294901760
    %1613 = vmatpush1.msra.mxu0 %v1612
    %1614 = vmatprep.subr.mxu0 0.0
    %v1615 = vand.u32 %v1132, 4294901760
    %v1616 = vsub.f32 %v1132, %v1615
    %v1617 = vand.u32 %v1616, 4294901760
    %1618 = vmatpush1.msra.mxu0 %v1617
    %1619 = vmatprep.subr.mxu0 0.0
    %v1620 = vand.u32 %v1133, 4294901760
    %v1621 = vsub.f32 %v1133, %v1620
    %v1622 = vand.u32 %v1621, 4294901760
    %1623 = vmatpush1.msra.mxu0 %v1622
    %1624 = vmatprep.subr.mxu0 0.0
    %v1625 = vand.u32 %v1134, 4294901760
    %v1626 = vsub.f32 %v1134, %v1625
    %v1627 = vand.u32 %v1626, 4294901760
    %1628 = vmatpush1.msra.mxu0 %v1627
    %1629 = vmatprep.subr.mxu0 0.0
    %v1630 = vand.u32 %v1135, 4294901760
    %v1631 = vsub.f32 %v1135, %v1630
    %v1632 = vand.u32 %v1631, 4294901760
    %1633 = vmatpush1.msra.mxu0 %v1632
    %1634 = vmatprep.subr.mxu0 0.0
    %v1635 = vand.u32 %v1136, 4294901760
    %v1636 = vsub.f32 %v1136, %v1635
    %v1637 = vand.u32 %v1636, 4294901760
    %1638 = vmatpush1.msra.mxu0 %v1637
    %1639 = vmatprep.subr.mxu0 0.0
    %v1640 = vand.u32 %v1137, 4294901760
    %v1641 = vsub.f32 %v1137, %v1640
    %v1642 = vand.u32 %v1641, 4294901760
    %1643 = vmatpush1.msra.mxu0 %v1642
    %1644 = vmatprep.subr.mxu0 0.0
    %v1645 = vand.u32 %v1138, 4294901760
    %v1646 = vsub.f32 %v1138, %v1645
    %v1647 = vand.u32 %v1646, 4294901760
    %1648 = vmatpush1.msra.mxu0 %v1647
    %1649 = vmatprep.subr.mxu0 0.0
    %v1650 = vand.u32 %v1139, 4294901760
    %v1651 = vsub.f32 %v1139, %v1650
    %v1652 = vand.u32 %v1651, 4294901760
    %1653 = vmatpush1.msra.mxu0 %v1652
    %1654 = vmatprep.subr.mxu0 0.0
    %v1655 = vand.u32 %v1140, 4294901760
    %v1656 = vsub.f32 %v1140, %v1655
    %v1657 = vand.u32 %v1656, 4294901760
    %1658 = vmatpush1.msra.mxu0 %v1657
    %1659 = vmatprep.subr.mxu0 0.0
    %1660 = vmatpush1.msra.mxu0 0.0
    %1661 = vmatprep.subr.mxu0 0.0
    %1662 = vmatpush1.msra.mxu0 0.0
    %1663 = vmatprep.subr.mxu0 0.0
    %1664 = vmatpush1.msra.mxu0 0.0
    %1665 = vmatprep.subr.mxu0 0.0
    %1666 = vmatpush1.msra.mxu0 0.0
    %1667 = vmatprep.subr.mxu0 0.0
    %1668 = vmatpush1.msra.mxu0 0.0
    %1669 = vmatprep.subr.mxu0 0.0
    %1670 = vmatpush1.msra.mxu0 0.0
    %1671 = vmatprep.subr.mxu0 0.0
    %1672 = vmatpush1.msra.mxu0 0.0
    %1673 = vmatprep.subr.mxu0 0.0
    %1674 = vmatpush1.msra.mxu0 0.0
    %1675 = vmatprep.subr.mxu0 0.0
    %1676 = vmatpush1.msra.mxu0 0.0
    %1677 = vmatprep.subr.mxu0 0.0
    %1678 = vmatpush1.msra.mxu0 0.0
    %1679 = vmatprep.subr.mxu0 0.0
    %1680 = vmatpush1.msra.mxu0 0.0
    %1681 = vmatprep.subr.mxu0 0.0
    %1682 = vmatpush1.msra.mxu0 0.0
    %1683 = vmatprep.subr.mxu0 0.0
    %1684 = vmatpush1.msra.mxu0 0.0
    %1685 = vmatprep.subr.mxu0 0.0
    %1686 = vmatpush1.msra.mxu0 0.0
    %1687 = vmatprep.subr.mxu0 0.0
    %1688 = vmatpush1.msra.mxu0 0.0
    %1689 = vmatprep.subr.mxu0 0.0
    %1690 = vmatpush1.msra.mxu0 0.0
    %1691 = vmatprep.subr.mxu0 0.0
    %1692 = vmatpush1.msra.mxu0 0.0
    %1693 = vmatprep.mubr.f32.mxu0 0.0
    %v1694 = vand.u32 %v1156, 4294901760
    %1695 = vmatmul.mubr.f32.gmra.mrb[0].mxu0 %v1694
    %v1696 = vpop.f32.mrb[0].mxu0
    %v1697 = vadd.f32 %v1581, %v1696
    %v1698 = vpop.f32.mrb[0].mxu0
    %1699 = vdwg.mxu0
    %1700 = vmatprep.subr.mxu0 0.0
    %v1701 = vand.u32 %v1126, 4294901760
    %1702 = vmatpush1.msra.mxu0 %v1701
    %1703 = vmatprep.subr.mxu0 0.0
    %v1704 = vand.u32 %v1127, 4294901760
    %1705 = vmatpush1.msra.mxu0 %v1704
    %1706 = vmatprep.subr.mxu0 0.0
    %v1707 = vand.u32 %v1128, 4294901760
    %1708 = vmatpush1.msra.mxu0 %v1707
    %1709 = vmatprep.subr.mxu0 0.0
    %v1710 = vand.u32 %v1129, 4294901760
    %1711 = vmatpush1.msra.mxu0 %v1710
    %1712 = vmatprep.subr.mxu0 0.0
    %v1713 = vand.u32 %v1130, 4294901760
    %1714 = vmatpush1.msra.mxu0 %v1713
    %1715 = vmatprep.subr.mxu0 0.0
    %v1716 = vand.u32 %v1131, 4294901760
    %1717 = vmatpush1.msra.mxu0 %v1716
    %1718 = vmatprep.subr.mxu0 0.0
    %v1719 = vand.u32 %v1132, 4294901760
    %1720 = vmatpush1.msra.mxu0 %v1719
    %1721 = vmatprep.subr.mxu0 0.0
    %v1722 = vand.u32 %v1133, 4294901760
    %1723 = vmatpush1.msra.mxu0 %v1722
    %1724 = vmatprep.subr.mxu0 0.0
    %v1725 = vand.u32 %v1134, 4294901760
    %1726 = vmatpush1.msra.mxu0 %v1725
    %1727 = vmatprep.subr.mxu0 0.0
    %v1728 = vand.u32 %v1135, 4294901760
    %1729 = vmatpush1.msra.mxu0 %v1728
    %1730 = vmatprep.subr.mxu0 0.0
    %v1731 = vand.u32 %v1136, 4294901760
    %1732 = vmatpush1.msra.mxu0 %v1731
    %1733 = vmatprep.subr.mxu0 0.0
    %v1734 = vand.u32 %v1137, 4294901760
    %1735 = vmatpush1.msra.mxu0 %v1734
    %1736 = vmatprep.subr.mxu0 0.0
    %v1737 = vand.u32 %v1138, 4294901760
    %1738 = vmatpush1.msra.mxu0 %v1737
    %1739 = vmatprep.subr.mxu0 0.0
    %v1740 = vand.u32 %v1139, 4294901760
    %1741 = vmatpush1.msra.mxu0 %v1740
    %1742 = vmatprep.subr.mxu0 0.0
    %v1743 = vand.u32 %v1140, 4294901760
    %1744 = vmatpush1.msra.mxu0 %v1743
    %1745 = vmatprep.subr.mxu0 0.0
    %1746 = vmatpush1.msra.mxu0 0.0
    %1747 = vmatprep.subr.mxu0 0.0
    %1748 = vmatpush1.msra.mxu0 0.0
    %1749 = vmatprep.subr.mxu0 0.0
    %1750 = vmatpush1.msra.mxu0 0.0
    %1751 = vmatprep.subr.mxu0 0.0
    %1752 = vmatpush1.msra.mxu0 0.0
    %1753 = vmatprep.subr.mxu0 0.0
    %1754 = vmatpush1.msra.mxu0 0.0
    %1755 = vmatprep.subr.mxu0 0.0
    %1756 = vmatpush1.msra.mxu0 0.0
    %1757 = vmatprep.subr.mxu0 0.0
    %1758 = vmatpush1.msra.mxu0 0.0
    %1759 = vmatprep.subr.mxu0 0.0
    %1760 = vmatpush1.msra.mxu0 0.0
    %1761 = vmatprep.subr.mxu0 0.0
    %1762 = vmatpush1.msra.mxu0 0.0
    %1763 = vmatprep.subr.mxu0 0.0
    %1764 = vmatpush1.msra.mxu0 0.0
    %1765 = vmatprep.subr.mxu0 0.0
    %1766 = vmatpush1.msra.mxu0 0.0
    %1767 = vmatprep.subr.mxu0 0.0
    %1768 = vmatpush1.msra.mxu0 0.0
    %1769 = vmatprep.subr.mxu0 0.0
    %1770 = vmatpush1.msra.mxu0 0.0
    %1771 = vmatprep.subr.mxu0 0.0
    %1772 = vmatpush1.msra.mxu0 0.0
    %1773 = vmatprep.subr.mxu0 0.0
    %1774 = vmatpush1.msra.mxu0 0.0
    %1775 = vmatprep.subr.mxu0 0.0
    %1776 = vmatpush1.msra.mxu0 0.0
    %1777 = vmatprep.subr.mxu0 0.0
    %1778 = vmatpush1.msra.mxu0 0.0
    %1779 = vmatprep.mubr.f32.mxu0 0.0
    %v1780 = vand.u32 %v1156, 4294901760
    %1781 = vmatmul.mubr.f32.gmra.mrb[0].mxu0 %v1780
    %v1782 = vpop.f32.mrb[0].mxu0
    %v1783 = vadd.f32 %v1697, %v1782
    %v1784 = vpop.f32.mrb[0].mxu0
    %1785 = vdwg.mxu0
    %vm1786 = vcmask 517120
    %1787 = vst.msk [vmem:[%s4] sm:$0x3] %vm1786, %v1783
    // Predicated region
    $region34: #{positive_definite_matrix.1} parent=1 // pred_check
      _
    $region35: #{positive_definite_matrix.1} parent=1 // pred_check_branch
      %1789 = sbr.rel (0) target = $region37
    $region36: #{positive_definite_matrix.1} parent=1 // pred_region
      _
    $region37: #{positive_definite_matrix.1} parent=1 // pred_fallthru
      _
    // Predicated region
    $region38: #{positive_definite_matrix.1} parent=1 // pred_check
      _
    $region39: #{positive_definite_matrix.1} parent=1 // pred_check_branch
      %1791 = sbr.rel (0) target = $region41
    $region40: #{positive_definite_matrix.1} parent=1 // pred_region
      _
    $region41: #{positive_definite_matrix.1} parent=1 // pred_fallthru
      _
    %1792 = vsyncpa [#allocation3], 1
    %1793 = vsyncpa [#allocation5], 1
    %1794 = vsyncpa [#allocation8], 1

</llo_original>
